<compile_context>
chip_gen: v7x
topology: tpu7x:2x2x1
jax: 0.10.0
libtpu: 0.0.40
codegen_flags: <defaults>
</compile_context>

<pallas_src>
from functools import partial

import jax
import jax.numpy as jnp
from jax import lax
from jax.experimental import pallas as pl
from jax.experimental.pallas import tpu as pltpu


# ---------------------------------------------------------------------------
# Fused Pallas kernel: QKV linear -> per-head softmax attention -> output linear
# ---------------------------------------------------------------------------

def _channel_attention_kernel(x_ref, wqkv_ref, bqkv_ref, wproj_ref, bproj_ref,
                              o_ref, qkv_ref, oheads_ref, *, num_heads):
    # x_ref:      (C, D)    bf16  one batch of channel tokens
    # wqkv_ref:   (D, 3D)   bf16  pre-transposed qkv weight, scale folded into Q cols
    # bqkv_ref:   (1, 3D)   f32
    # wproj_ref:  (D, D)    bf16  pre-transposed proj weight
    # bproj_ref:  (1, D)    f32
    # o_ref:      (C, D)    output (x dtype)
    # qkv_ref:    (C, 3D)   bf16 VMEM scratch (staged QKV)
    # oheads_ref: (C, D)    bf16 VMEM scratch (per-head outputs at lane offsets)
    C, D = x_ref.shape
    d = D // num_heads

    # --- QKV projection: bf16 operands on the MXU, f32 accumulation -----------
    # Column layout is [q_h0 .. q_h{H-1} | k_h0 .. | v_h0 ..], matching the
    # PyTorch reshape(B, C, 3, H, d). Scale is already folded into the Q columns.
    qkv = jnp.dot(x_ref[...], wqkv_ref[...], preferred_element_type=jnp.float32)
    qkv = qkv + bqkv_ref[...]
    qkv_ref[...] = qkv.astype(qkv_ref.dtype)          # stage in VMEM, bounded live range

    # --- Per-head attention; write o_h at its lane offset ---------------------
    # Static slices of VMEM refs are cheap views. head_dim < 128 here, so slices
    # are not lane-tile aligned; see TODO(synk) above for production alignment.
    for h in range(num_heads):
        lo = h * d
        q_h = qkv_ref[:, lo:lo + d]                    # (C, d) bf16 (scale pre-folded)
        k_h = qkv_ref[:, D + lo:D + lo + d]            # (C, d) bf16
        v_h = qkv_ref[:, 2 * D + lo:2 * D + lo + d]    # (C, d) bf16

        # scores: contract over d (q @ k^T without materializing k^T), f32 acc
        s = lax.dot_general(q_h, k_h,
                            dimension_numbers=(((1,), (1,)), ((), ())),
                            preferred_element_type=jnp.float32)       # (C, C) f32
        s = s - jnp.max(s, axis=-1, keepdims=True)                    # stable softmax (f32)
        p = jnp.exp(s)
        p = p * pl.reciprocal(jnp.sum(p, axis=-1, keepdims=True), approx=True)

        o_h = jnp.dot(p.astype(v_h.dtype), v_h,
                      preferred_element_type=jnp.float32)             # (C, d) f32
        oheads_ref[:, lo:lo + d] = o_h.astype(oheads_ref.dtype)

    # --- Single full-K output projection on the MXU ---------------------------
    out = jnp.dot(oheads_ref[...], wproj_ref[...],
                  preferred_element_type=jnp.float32) + bproj_ref[...]
    o_ref[...] = out.astype(o_ref.dtype)               # one lane-dense store per step


def channel_attention(x, kparams, num_heads, compute_dtype=jnp.bfloat16):
    """x: (B, C, D). kparams are kernel-ready (bf16, (Din,Dout), scale folded)."""
    B, C, D = x.shape

    kernel = partial(_channel_attention_kernel, num_heads=num_heads)
    x_lp = x.astype(compute_dtype)                     # bf16 feed: halves x DMA bytes

    return pl.pallas_call(
        kernel,
        out_shape=jax.ShapeDtypeStruct((B, C, D), x.dtype),
        grid_spec=pltpu.PrefetchScalarGridSpec(
            num_scalar_prefetch=0,
            grid=(B,),
            in_specs=[
                pl.BlockSpec((None, C, D), lambda b: (b, 0, 0)),      # x[b]
                pl.BlockSpec((D, 3 * D), lambda b: (0, 0)),           # w_qkv (resident)
                pl.BlockSpec((1, 3 * D), lambda b: (0, 0)),           # b_qkv
                pl.BlockSpec((D, D), lambda b: (0, 0)),               # w_proj (resident)
                pl.BlockSpec((1, D), lambda b: (0, 0)),               # b_proj
            ],
            out_specs=pl.BlockSpec((None, C, D), lambda b: (b, 0, 0)),
            scratch_shapes=[
                pltpu.VMEM((C, 3 * D), compute_dtype),                # staged QKV
                pltpu.VMEM((C, D), compute_dtype),                    # per-head outputs
            ],
        ),
        compiler_params=pltpu.CompilerParams(
            dimension_semantics=("parallel",),         # shard batch across TCs (v7x)
            vmem_limit_bytes=64 * 1024 * 1024,
        ),
    )(x_lp, kparams["w_qkv"], kparams["b_qkv"], kparams["w_proj"], kparams["b_proj"])


# ---------------------------------------------------------------------------
# Params: raw (PyTorch nn.Linear layout) + one-time kernel packing
# ---------------------------------------------------------------------------

def init_params(key, embedding_dim):
    """Raw weights in PyTorch nn.Linear layout: W is (out_features, in_features)."""
    k1, k2, k3, k4 = jax.random.split(key, 4)
    s = 0.02
    D = embedding_dim
    return {
        "w_qkv": jax.random.normal(k1, (3 * D, D), jnp.float32) * s,
        "b_qkv": jax.random.normal(k2, (3 * D,), jnp.float32) * s,
        "w_proj": jax.random.normal(k3, (D, D), jnp.float32) * s,
        "b_proj": jax.random.normal(k4, (D,), jnp.float32) * s,
    }


def prepare_kernel_params(params, embedding_dim, num_heads, dtype=jnp.bfloat16):
    """One-time packing: transpose to (Din, Dout), fold softmax scale into the Q
    columns of w_qkv/b_qkv, cast weights to bf16 (biases stay f32)."""
    D = embedding_dim
    scale = (D // num_heads) ** (-0.5)
    col_scale = jnp.concatenate(
        [jnp.full((D,), scale, jnp.float32), jnp.ones((2 * D,), jnp.float32)])
    w_qkv = params["w_qkv"].T * col_scale[None, :]       # (D, 3D), Q cols pre-scaled
    b_qkv = params["b_qkv"] * col_scale
    return {
        "w_qkv": w_qkv.astype(dtype),
        "b_qkv": b_qkv.reshape(1, 3 * D).astype(jnp.float32),
        "w_proj": params["w_proj"].T.astype(dtype),      # (D, D)
        "b_proj": params["b_proj"].reshape(1, D).astype(jnp.float32),
    }


# ---------------------------------------------------------------------------
# Pure-JAX reference (mirrors the PyTorch forward exactly, all f32)
# ---------------------------------------------------------------------------

def channel_attention_ref(x, params, num_heads):
    B, C, D = x.shape
    d = D // num_heads
    scale = d ** (-0.5)
    qkv = x @ params["w_qkv"].T + params["b_qkv"]                      # (B, C, 3D)
    qkv = qkv.reshape(B, C, 3, num_heads, d).transpose(2, 0, 3, 1, 4)
    qkv = qkv.reshape(3, B * num_heads, C, d)
    q, k, v = qkv[0], qkv[1], qkv[2]
    attn = (q * scale) @ jnp.swapaxes(k, -2, -1)
    attn = jax.nn.softmax(attn, axis=-1)
    o = (attn @ v).reshape(B, num_heads, C, d).transpose(0, 2, 1, 3).reshape(B, C, D)
    return o @ params["w_proj"].T + params["b_proj"]


if __name__ == "__main__":
    B, C, D, H = 2, 4, 32, 8   # batch, channel tokens, embedding_dim, num_heads

    key = jax.random.PRNGKey(0)
    kx, kp = jax.random.split(key)
    x = jax.random.normal(kx, (B, C, D), jnp.float32)
    params = init_params(kp, D)
    kparams = prepare_kernel_params(params, D, H)

    out = jax.block_until_ready(channel_attention(x, kparams, H))
    ref = channel_attention_ref(x, params, H)

    assert out.shape == (B, C, D)
    # Tolerance accounts for bf16 matmul operands (f32 accumulation) and the
    # EUP approximate reciprocal in the softmax denominator.
    assert jnp.allclose(out, ref, atol=2e-2, rtol=2e-2), "Pallas output mismatch vs reference"

    print("KERNEL_OK")
</pallas_src>

<mosaic_0001>
module attributes {stable_mosaic.version = 11 : i64} {
  func.func @_channel_attention_kernel(%arg0: i32, %arg1: memref<1x4x32xbf16, #tpu.memory_space<vmem>>, %arg2: memref<32x96xbf16, #tpu.memory_space<vmem>>, %arg3: memref<1x96xf32, #tpu.memory_space<vmem>>, %arg4: memref<32x32xbf16, #tpu.memory_space<vmem>>, %arg5: memref<1x32xf32, #tpu.memory_space<vmem>>, %arg6: memref<1x4x32xf32, #tpu.memory_space<vmem>>, %arg7: memref<4x96xbf16, #tpu.memory_space<vmem>>, %arg8: memref<4x32xbf16, #tpu.memory_space<vmem>>) attributes {dimension_semantics = [#tpu.dimension_semantics<parallel>], iteration_bounds = array<i64: 2>, scalar_prefetch = 0 : i64, scratch_operands = 2 : i64, tpu.core_type = #tpu.core_type<tc>, window_params = [{transform_indices = @transform_0, window_bounds = array<i64: 1, 4, 32>}, {pipeline_mode = #tpu.pipeline_mode<synchronous>, transform_indices = @transform_1, window_bounds = array<i64: 32, 96>}, {pipeline_mode = #tpu.pipeline_mode<synchronous>, transform_indices = @transform_2, window_bounds = array<i64: 1, 96>}, {pipeline_mode = #tpu.pipeline_mode<synchronous>, transform_indices = @transform_3, window_bounds = array<i64: 32, 32>}, {pipeline_mode = #tpu.pipeline_mode<synchronous>, transform_indices = @transform_4, window_bounds = array<i64: 1, 32>}, {transform_indices = @transform_5, window_bounds = array<i64: 1, 4, 32>}]} {
    %c0 = arith.constant 0 : index
    %c0_0 = arith.constant 0 : index
    %c0_1 = arith.constant 0 : index
    %0 = vector.load %arg1[%c0, %c0_0, %c0_1] : memref<1x4x32xbf16, #tpu.memory_space<vmem>>, vector<1x4x32xbf16>
    %1 = vector.shape_cast %0 : vector<1x4x32xbf16> to vector<4x32xbf16>
    %c0_2 = arith.constant 0 : index
    %c0_3 = arith.constant 0 : index
    %2 = vector.load %arg2[%c0_2, %c0_3] : memref<32x96xbf16, #tpu.memory_space<vmem>>, vector<32x96xbf16>
    %cst = arith.constant dense<0.000000e+00> : vector<4x96xf32>
    %3 = tpu.matmul %1, %2, %cst {dimension_numbers = #tpu.dot_dimension_numbers<[1], [0], [0], [1], [0, 0, 1, 1], [], []>} : vector<4x32xbf16>, vector<32x96xbf16>, vector<4x96xf32> -> vector<4x96xf32>
    %c0_4 = arith.constant 0 : index
    %c0_5 = arith.constant 0 : index
    %4 = vector.load %arg3[%c0_4, %c0_5] : memref<1x96xf32, #tpu.memory_space<vmem>>, vector<1x96xf32>
    %5 = vector.broadcast %4 : vector<1x96xf32> to vector<4x96xf32>
    %6 = arith.addf %3, %5 : vector<4x96xf32>
    %7 = arith.truncf %6 : vector<4x96xf32> to vector<4x96xbf16>
    %c0_6 = arith.constant 0 : index
    %c0_7 = arith.constant 0 : index
    %8 = vector.load %arg7[%c0_6, %c0_7] : memref<4x96xbf16, #tpu.memory_space<vmem>>, vector<4x96xbf16>
    tpu.vector_store %arg7[%c0_6, %c0_7], %7 {strides = array<i32>} : memref<4x96xbf16, #tpu.memory_space<vmem>>, vector<4x96xbf16>,
    %c0_8 = arith.constant 0 : index
    %c0_9 = arith.constant 0 : index
    %9 = vector.load %arg7[%c0_8, %c0_9] : memref<4x96xbf16, #tpu.memory_space<vmem>>, vector<4x4xbf16>
    %c0_10 = arith.constant 0 : index
    %c32 = arith.constant 32 : index
    %10 = vector.load %arg7[%c0_10, %c32] : memref<4x96xbf16, #tpu.memory_space<vmem>>, vector<4x4xbf16>
    %c0_11 = arith.constant 0 : index
    %c64 = arith.constant 64 : index
    %11 = vector.load %arg7[%c0_11, %c64] : memref<4x96xbf16, #tpu.memory_space<vmem>>, vector<4x4xbf16>
    %cst_12 = arith.constant dense<0.000000e+00> : vector<4x4xf32>
    %12 = tpu.matmul %9, %10, %cst_12 {dimension_numbers = #tpu.dot_dimension_numbers<[1], [1], [0], [0], [0, 0, 1, 0], [], []>} : vector<4x4xbf16>, vector<4x4xbf16>, vector<4x4xf32> -> vector<4x4xf32>
    %cst_13 = arith.constant dense<0xFF800000> : vector<4xf32>
    %13 = vector.multi_reduction <maximumf>, %12, %cst_13 [1] : vector<4x4xf32> to vector<4xf32>
    %14 = vector.shape_cast %13 : vector<4xf32> to vector<4x1xf32>
    %15 = vector.broadcast %14 : vector<4x1xf32> to vector<4x4xf32>
    %16 = arith.subf %12, %15 : vector<4x4xf32>
    %17 = math.exp %16 : vector<4x4xf32>
    %cst_14 = arith.constant dense<0.000000e+00> : vector<4xf32>
    %18 = vector.multi_reduction <add>, %17, %cst_14 [1] : vector<4x4xf32> to vector<4xf32>
    %19 = vector.shape_cast %18 : vector<4xf32> to vector<4x1xf32>
    %20 = tpu.reciprocal %19 {approx = true} : vector<4x1xf32> -> vector<4x1xf32>
    %21 = vector.broadcast %20 : vector<4x1xf32> to vector<4x4xf32>
    %22 = arith.mulf %17, %21 : vector<4x4xf32>
    %23 = arith.truncf %22 : vector<4x4xf32> to vector<4x4xbf16>
    %cst_15 = arith.constant dense<0.000000e+00> : vector<4x4xf32>
    %24 = tpu.matmul %23, %11, %cst_15 {dimension_numbers = #tpu.dot_dimension_numbers<[1], [0], [0], [1], [0, 0, 1, 1], [], []>} : vector<4x4xbf16>, vector<4x4xbf16>, vector<4x4xf32> -> vector<4x4xf32>
    %25 = arith.truncf %24 : vector<4x4xf32> to vector<4x4xbf16>
    %c0_16 = arith.constant 0 : index
    %c0_17 = arith.constant 0 : index
    %26 = vector.load %arg8[%c0_16, %c0_17] : memref<4x32xbf16, #tpu.memory_space<vmem>>, vector<4x4xbf16>
    tpu.vector_store %arg8[%c0_16, %c0_17], %25 {strides = array<i32>} : memref<4x32xbf16, #tpu.memory_space<vmem>>, vector<4x4xbf16>,
    %c0_18 = arith.constant 0 : index
    %c4 = arith.constant 4 : index
    %27 = vector.load %arg7[%c0_18, %c4] : memref<4x96xbf16, #tpu.memory_space<vmem>>, vector<4x4xbf16>
    %c0_19 = arith.constant 0 : index
    %c36 = arith.constant 36 : index
    %28 = vector.load %arg7[%c0_19, %c36] : memref<4x96xbf16, #tpu.memory_space<vmem>>, vector<4x4xbf16>
    %c0_20 = arith.constant 0 : index
    %c68 = arith.constant 68 : index
    %29 = vector.load %arg7[%c0_20, %c68] : memref<4x96xbf16, #tpu.memory_space<vmem>>, vector<4x4xbf16>
    %cst_21 = arith.constant dense<0.000000e+00> : vector<4x4xf32>
    %30 = tpu.matmul %27, %28, %cst_21 {dimension_numbers = #tpu.dot_dimension_numbers<[1], [1], [0], [0], [0, 0, 1, 0], [], []>} : vector<4x4xbf16>, vector<4x4xbf16>, vector<4x4xf32> -> vector<4x4xf32>
    %cst_22 = arith.constant dense<0xFF800000> : vector<4xf32>
    %31 = vector.multi_reduction <maximumf>, %30, %cst_22 [1] : vector<4x4xf32> to vector<4xf32>
    %32 = vector.shape_cast %31 : vector<4xf32> to vector<4x1xf32>
    %33 = vector.broadcast %32 : vector<4x1xf32> to vector<4x4xf32>
    %34 = arith.subf %30, %33 : vector<4x4xf32>
    %35 = math.exp %34 : vector<4x4xf32>
    %cst_23 = arith.constant dense<0.000000e+00> : vector<4xf32>
    %36 = vector.multi_reduction <add>, %35, %cst_23 [1] : vector<4x4xf32> to vector<4xf32>
    %37 = vector.shape_cast %36 : vector<4xf32> to vector<4x1xf32>
    %38 = tpu.reciprocal %37 {approx = true} : vector<4x1xf32> -> vector<4x1xf32>
    %39 = vector.broadcast %38 : vector<4x1xf32> to vector<4x4xf32>
    %40 = arith.mulf %35, %39 : vector<4x4xf32>
    %41 = arith.truncf %40 : vector<4x4xf32> to vector<4x4xbf16>
    %cst_24 = arith.constant dense<0.000000e+00> : vector<4x4xf32>
    %42 = tpu.matmul %41, %29, %cst_24 {dimension_numbers = #tpu.dot_dimension_numbers<[1], [0], [0], [1], [0, 0, 1, 1], [], []>} : vector<4x4xbf16>, vector<4x4xbf16>, vector<4x4xf32> -> vector<4x4xf32>
    %43 = arith.truncf %42 : vector<4x4xf32> to vector<4x4xbf16>
    %c0_25 = arith.constant 0 : index
    %c4_26 = arith.constant 4 : index
    %44 = vector.load %arg8[%c0_25, %c4_26] : memref<4x32xbf16, #tpu.memory_space<vmem>>, vector<4x4xbf16>
    tpu.vector_store %arg8[%c0_25, %c4_26], %43 {strides = array<i32>} : memref<4x32xbf16, #tpu.memory_space<vmem>>, vector<4x4xbf16>,
    %c0_27 = arith.constant 0 : index
    %c8 = arith.constant 8 : index
    %45 = vector.load %arg7[%c0_27, %c8] : memref<4x96xbf16, #tpu.memory_space<vmem>>, vector<4x4xbf16>
    %c0_28 = arith.constant 0 : index
    %c40 = arith.constant 40 : index
    %46 = vector.load %arg7[%c0_28, %c40] : memref<4x96xbf16, #tpu.memory_space<vmem>>, vector<4x4xbf16>
    %c0_29 = arith.constant 0 : index
    %c72 = arith.constant 72 : index
    %47 = vector.load %arg7[%c0_29, %c72] : memref<4x96xbf16, #tpu.memory_space<vmem>>, vector<4x4xbf16>
    %cst_30 = arith.constant dense<0.000000e+00> : vector<4x4xf32>
    %48 = tpu.matmul %45, %46, %cst_30 {dimension_numbers = #tpu.dot_dimension_numbers<[1], [1], [0], [0], [0, 0, 1, 0], [], []>} : vector<4x4xbf16>, vector<4x4xbf16>, vector<4x4xf32> -> vector<4x4xf32>
    %cst_31 = arith.constant dense<0xFF800000> : vector<4xf32>
    %49 = vector.multi_reduction <maximumf>, %48, %cst_31 [1] : vector<4x4xf32> to vector<4xf32>
    %50 = vector.shape_cast %49 : vector<4xf32> to vector<4x1xf32>
    %51 = vector.broadcast %50 : vector<4x1xf32> to vector<4x4xf32>
    %52 = arith.subf %48, %51 : vector<4x4xf32>
    %53 = math.exp %52 : vector<4x4xf32>
    %cst_32 = arith.constant dense<0.000000e+00> : vector<4xf32>
    %54 = vector.multi_reduction <add>, %53, %cst_32 [1] : vector<4x4xf32> to vector<4xf32>
    %55 = vector.shape_cast %54 : vector<4xf32> to vector<4x1xf32>
    %56 = tpu.reciprocal %55 {approx = true} : vector<4x1xf32> -> vector<4x1xf32>
    %57 = vector.broadcast %56 : vector<4x1xf32> to vector<4x4xf32>
    %58 = arith.mulf %53, %57 : vector<4x4xf32>
    %59 = arith.truncf %58 : vector<4x4xf32> to vector<4x4xbf16>
    %cst_33 = arith.constant dense<0.000000e+00> : vector<4x4xf32>
    %60 = tpu.matmul %59, %47, %cst_33 {dimension_numbers = #tpu.dot_dimension_numbers<[1], [0], [0], [1], [0, 0, 1, 1], [], []>} : vector<4x4xbf16>, vector<4x4xbf16>, vector<4x4xf32> -> vector<4x4xf32>
    %61 = arith.truncf %60 : vector<4x4xf32> to vector<4x4xbf16>
    %c0_34 = arith.constant 0 : index
    %c8_35 = arith.constant 8 : index
    %62 = vector.load %arg8[%c0_34, %c8_35] : memref<4x32xbf16, #tpu.memory_space<vmem>>, vector<4x4xbf16>
    tpu.vector_store %arg8[%c0_34, %c8_35], %61 {strides = array<i32>} : memref<4x32xbf16, #tpu.memory_space<vmem>>, vector<4x4xbf16>,
    %c0_36 = arith.constant 0 : index
    %c12 = arith.constant 12 : index
    %63 = vector.load %arg7[%c0_36, %c12] : memref<4x96xbf16, #tpu.memory_space<vmem>>, vector<4x4xbf16>
    %c0_37 = arith.constant 0 : index
    %c44 = arith.constant 44 : index
    %64 = vector.load %arg7[%c0_37, %c44] : memref<4x96xbf16, #tpu.memory_space<vmem>>, vector<4x4xbf16>
    %c0_38 = arith.constant 0 : index
    %c76 = arith.constant 76 : index
    %65 = vector.load %arg7[%c0_38, %c76] : memref<4x96xbf16, #tpu.memory_space<vmem>>, vector<4x4xbf16>
    %cst_39 = arith.constant dense<0.000000e+00> : vector<4x4xf32>
    %66 = tpu.matmul %63, %64, %cst_39 {dimension_numbers = #tpu.dot_dimension_numbers<[1], [1], [0], [0], [0, 0, 1, 0], [], []>} : vector<4x4xbf16>, vector<4x4xbf16>, vector<4x4xf32> -> vector<4x4xf32>
    %cst_40 = arith.constant dense<0xFF800000> : vector<4xf32>
    %67 = vector.multi_reduction <maximumf>, %66, %cst_40 [1] : vector<4x4xf32> to vector<4xf32>
    %68 = vector.shape_cast %67 : vector<4xf32> to vector<4x1xf32>
    %69 = vector.broadcast %68 : vector<4x1xf32> to vector<4x4xf32>
    %70 = arith.subf %66, %69 : vector<4x4xf32>
    %71 = math.exp %70 : vector<4x4xf32>
    %cst_41 = arith.constant dense<0.000000e+00> : vector<4xf32>
    %72 = vector.multi_reduction <add>, %71, %cst_41 [1] : vector<4x4xf32> to vector<4xf32>
    %73 = vector.shape_cast %72 : vector<4xf32> to vector<4x1xf32>
    %74 = tpu.reciprocal %73 {approx = true} : vector<4x1xf32> -> vector<4x1xf32>
    %75 = vector.broadcast %74 : vector<4x1xf32> to vector<4x4xf32>
    %76 = arith.mulf %71, %75 : vector<4x4xf32>
    %77 = arith.truncf %76 : vector<4x4xf32> to vector<4x4xbf16>
    %cst_42 = arith.constant dense<0.000000e+00> : vector<4x4xf32>
    %78 = tpu.matmul %77, %65, %cst_42 {dimension_numbers = #tpu.dot_dimension_numbers<[1], [0], [0], [1], [0, 0, 1, 1], [], []>} : vector<4x4xbf16>, vector<4x4xbf16>, vector<4x4xf32> -> vector<4x4xf32>
    %79 = arith.truncf %78 : vector<4x4xf32> to vector<4x4xbf16>
    %c0_43 = arith.constant 0 : index
    %c12_44 = arith.constant 12 : index
    %80 = vector.load %arg8[%c0_43, %c12_44] : memref<4x32xbf16, #tpu.memory_space<vmem>>, vector<4x4xbf16>
    tpu.vector_store %arg8[%c0_43, %c12_44], %79 {strides = array<i32>} : memref<4x32xbf16, #tpu.memory_space<vmem>>, vector<4x4xbf16>,
    %c0_45 = arith.constant 0 : index
    %c16 = arith.constant 16 : index
    %81 = vector.load %arg7[%c0_45, %c16] : memref<4x96xbf16, #tpu.memory_space<vmem>>, vector<4x4xbf16>
    %c0_46 = arith.constant 0 : index
    %c48 = arith.constant 48 : index
    %82 = vector.load %arg7[%c0_46, %c48] : memref<4x96xbf16, #tpu.memory_space<vmem>>, vector<4x4xbf16>
    %c0_47 = arith.constant 0 : index
    %c80 = arith.constant 80 : index
    %83 = vector.load %arg7[%c0_47, %c80] : memref<4x96xbf16, #tpu.memory_space<vmem>>, vector<4x4xbf16>
    %cst_48 = arith.constant dense<0.000000e+00> : vector<4x4xf32>
    %84 = tpu.matmul %81, %82, %cst_48 {dimension_numbers = #tpu.dot_dimension_numbers<[1], [1], [0], [0], [0, 0, 1, 0], [], []>} : vector<4x4xbf16>, vector<4x4xbf16>, vector<4x4xf32> -> vector<4x4xf32>
    %cst_49 = arith.constant dense<0xFF800000> : vector<4xf32>
    %85 = vector.multi_reduction <maximumf>, %84, %cst_49 [1] : vector<4x4xf32> to vector<4xf32>
    %86 = vector.shape_cast %85 : vector<4xf32> to vector<4x1xf32>
    %87 = vector.broadcast %86 : vector<4x1xf32> to vector<4x4xf32>
    %88 = arith.subf %84, %87 : vector<4x4xf32>
    %89 = math.exp %88 : vector<4x4xf32>
    %cst_50 = arith.constant dense<0.000000e+00> : vector<4xf32>
    %90 = vector.multi_reduction <add>, %89, %cst_50 [1] : vector<4x4xf32> to vector<4xf32>
    %91 = vector.shape_cast %90 : vector<4xf32> to vector<4x1xf32>
    %92 = tpu.reciprocal %91 {approx = true} : vector<4x1xf32> -> vector<4x1xf32>
    %93 = vector.broadcast %92 : vector<4x1xf32> to vector<4x4xf32>
    %94 = arith.mulf %89, %93 : vector<4x4xf32>
    %95 = arith.truncf %94 : vector<4x4xf32> to vector<4x4xbf16>
    %cst_51 = arith.constant dense<0.000000e+00> : vector<4x4xf32>
    %96 = tpu.matmul %95, %83, %cst_51 {dimension_numbers = #tpu.dot_dimension_numbers<[1], [0], [0], [1], [0, 0, 1, 1], [], []>} : vector<4x4xbf16>, vector<4x4xbf16>, vector<4x4xf32> -> vector<4x4xf32>
    %97 = arith.truncf %96 : vector<4x4xf32> to vector<4x4xbf16>
    %c0_52 = arith.constant 0 : index
    %c16_53 = arith.constant 16 : index
    %98 = vector.load %arg8[%c0_52, %c16_53] : memref<4x32xbf16, #tpu.memory_space<vmem>>, vector<4x4xbf16>
    tpu.vector_store %arg8[%c0_52, %c16_53], %97 {strides = array<i32>} : memref<4x32xbf16, #tpu.memory_space<vmem>>, vector<4x4xbf16>,
    %c0_54 = arith.constant 0 : index
    %c20 = arith.constant 20 : index
    %99 = vector.load %arg7[%c0_54, %c20] : memref<4x96xbf16, #tpu.memory_space<vmem>>, vector<4x4xbf16>
    %c0_55 = arith.constant 0 : index
    %c52 = arith.constant 52 : index
    %100 = vector.load %arg7[%c0_55, %c52] : memref<4x96xbf16, #tpu.memory_space<vmem>>, vector<4x4xbf16>
    %c0_56 = arith.constant 0 : index
    %c84 = arith.constant 84 : index
    %101 = vector.load %arg7[%c0_56, %c84] : memref<4x96xbf16, #tpu.memory_space<vmem>>, vector<4x4xbf16>
    %cst_57 = arith.constant dense<0.000000e+00> : vector<4x4xf32>
    %102 = tpu.matmul %99, %100, %cst_57 {dimension_numbers = #tpu.dot_dimension_numbers<[1], [1], [0], [0], [0, 0, 1, 0], [], []>} : vector<4x4xbf16>, vector<4x4xbf16>, vector<4x4xf32> -> vector<4x4xf32>
    %cst_58 = arith.constant dense<0xFF800000> : vector<4xf32>
    %103 = vector.multi_reduction <maximumf>, %102, %cst_58 [1] : vector<4x4xf32> to vector<4xf32>
    %104 = vector.shape_cast %103 : vector<4xf32> to vector<4x1xf32>
    %105 = vector.broadcast %104 : vector<4x1xf32> to vector<4x4xf32>
    %106 = arith.subf %102, %105 : vector<4x4xf32>
    %107 = math.exp %106 : vector<4x4xf32>
    %cst_59 = arith.constant dense<0.000000e+00> : vector<4xf32>
    %108 = vector.multi_reduction <add>, %107, %cst_59 [1] : vector<4x4xf32> to vector<4xf32>
    %109 = vector.shape_cast %108 : vector<4xf32> to vector<4x1xf32>
    %110 = tpu.reciprocal %109 {approx = true} : vector<4x1xf32> -> vector<4x1xf32>
    %111 = vector.broadcast %110 : vector<4x1xf32> to vector<4x4xf32>
    %112 = arith.mulf %107, %111 : vector<4x4xf32>
    %113 = arith.truncf %112 : vector<4x4xf32> to vector<4x4xbf16>
    %cst_60 = arith.constant dense<0.000000e+00> : vector<4x4xf32>
    %114 = tpu.matmul %113, %101, %cst_60 {dimension_numbers = #tpu.dot_dimension_numbers<[1], [0], [0], [1], [0, 0, 1, 1], [], []>} : vector<4x4xbf16>, vector<4x4xbf16>, vector<4x4xf32> -> vector<4x4xf32>
    %115 = arith.truncf %114 : vector<4x4xf32> to vector<4x4xbf16>
    %c0_61 = arith.constant 0 : index
    %c20_62 = arith.constant 20 : index
    %116 = vector.load %arg8[%c0_61, %c20_62] : memref<4x32xbf16, #tpu.memory_space<vmem>>, vector<4x4xbf16>
    tpu.vector_store %arg8[%c0_61, %c20_62], %115 {strides = array<i32>} : memref<4x32xbf16, #tpu.memory_space<vmem>>, vector<4x4xbf16>,
    %c0_63 = arith.constant 0 : index
    %c24 = arith.constant 24 : index
    %117 = vector.load %arg7[%c0_63, %c24] : memref<4x96xbf16, #tpu.memory_space<vmem>>, vector<4x4xbf16>
    %c0_64 = arith.constant 0 : index
    %c56 = arith.constant 56 : index
    %118 = vector.load %arg7[%c0_64, %c56] : memref<4x96xbf16, #tpu.memory_space<vmem>>, vector<4x4xbf16>
    %c0_65 = arith.constant 0 : index
    %c88 = arith.constant 88 : index
    %119 = vector.load %arg7[%c0_65, %c88] : memref<4x96xbf16, #tpu.memory_space<vmem>>, vector<4x4xbf16>
    %cst_66 = arith.constant dense<0.000000e+00> : vector<4x4xf32>
    %120 = tpu.matmul %117, %118, %cst_66 {dimension_numbers = #tpu.dot_dimension_numbers<[1], [1], [0], [0], [0, 0, 1, 0], [], []>} : vector<4x4xbf16>, vector<4x4xbf16>, vector<4x4xf32> -> vector<4x4xf32>
    %cst_67 = arith.constant dense<0xFF800000> : vector<4xf32>
    %121 = vector.multi_reduction <maximumf>, %120, %cst_67 [1] : vector<4x4xf32> to vector<4xf32>
    %122 = vector.shape_cast %121 : vector<4xf32> to vector<4x1xf32>
    %123 = vector.broadcast %122 : vector<4x1xf32> to vector<4x4xf32>
    %124 = arith.subf %120, %123 : vector<4x4xf32>
    %125 = math.exp %124 : vector<4x4xf32>
    %cst_68 = arith.constant dense<0.000000e+00> : vector<4xf32>
    %126 = vector.multi_reduction <add>, %125, %cst_68 [1] : vector<4x4xf32> to vector<4xf32>
    %127 = vector.shape_cast %126 : vector<4xf32> to vector<4x1xf32>
    %128 = tpu.reciprocal %127 {approx = true} : vector<4x1xf32> -> vector<4x1xf32>
    %129 = vector.broadcast %128 : vector<4x1xf32> to vector<4x4xf32>
    %130 = arith.mulf %125, %129 : vector<4x4xf32>
    %131 = arith.truncf %130 : vector<4x4xf32> to vector<4x4xbf16>
    %cst_69 = arith.constant dense<0.000000e+00> : vector<4x4xf32>
    %132 = tpu.matmul %131, %119, %cst_69 {dimension_numbers = #tpu.dot_dimension_numbers<[1], [0], [0], [1], [0, 0, 1, 1], [], []>} : vector<4x4xbf16>, vector<4x4xbf16>, vector<4x4xf32> -> vector<4x4xf32>
    %133 = arith.truncf %132 : vector<4x4xf32> to vector<4x4xbf16>
    %c0_70 = arith.constant 0 : index
    %c24_71 = arith.constant 24 : index
    %134 = vector.load %arg8[%c0_70, %c24_71] : memref<4x32xbf16, #tpu.memory_space<vmem>>, vector<4x4xbf16>
    tpu.vector_store %arg8[%c0_70, %c24_71], %133 {strides = array<i32>} : memref<4x32xbf16, #tpu.memory_space<vmem>>, vector<4x4xbf16>,
    %c0_72 = arith.constant 0 : index
    %c28 = arith.constant 28 : index
    %135 = vector.load %arg7[%c0_72, %c28] : memref<4x96xbf16, #tpu.memory_space<vmem>>, vector<4x4xbf16>
    %c0_73 = arith.constant 0 : index
    %c60 = arith.constant 60 : index
    %136 = vector.load %arg7[%c0_73, %c60] : memref<4x96xbf16, #tpu.memory_space<vmem>>, vector<4x4xbf16>
    %c0_74 = arith.constant 0 : index
    %c92 = arith.constant 92 : index
    %137 = vector.load %arg7[%c0_74, %c92] : memref<4x96xbf16, #tpu.memory_space<vmem>>, vector<4x4xbf16>
    %cst_75 = arith.constant dense<0.000000e+00> : vector<4x4xf32>
    %138 = tpu.matmul %135, %136, %cst_75 {dimension_numbers = #tpu.dot_dimension_numbers<[1], [1], [0], [0], [0, 0, 1, 0], [], []>} : vector<4x4xbf16>, vector<4x4xbf16>, vector<4x4xf32> -> vector<4x4xf32>
    %cst_76 = arith.constant dense<0xFF800000> : vector<4xf32>
    %139 = vector.multi_reduction <maximumf>, %138, %cst_76 [1] : vector<4x4xf32> to vector<4xf32>
    %140 = vector.shape_cast %139 : vector<4xf32> to vector<4x1xf32>
    %141 = vector.broadcast %140 : vector<4x1xf32> to vector<4x4xf32>
    %142 = arith.subf %138, %141 : vector<4x4xf32>
    %143 = math.exp %142 : vector<4x4xf32>
    %cst_77 = arith.constant dense<0.000000e+00> : vector<4xf32>
    %144 = vector.multi_reduction <add>, %143, %cst_77 [1] : vector<4x4xf32> to vector<4xf32>
    %145 = vector.shape_cast %144 : vector<4xf32> to vector<4x1xf32>
    %146 = tpu.reciprocal %145 {approx = true} : vector<4x1xf32> -> vector<4x1xf32>
    %147 = vector.broadcast %146 : vector<4x1xf32> to vector<4x4xf32>
    %148 = arith.mulf %143, %147 : vector<4x4xf32>
    %149 = arith.truncf %148 : vector<4x4xf32> to vector<4x4xbf16>
    %cst_78 = arith.constant dense<0.000000e+00> : vector<4x4xf32>
    %150 = tpu.matmul %149, %137, %cst_78 {dimension_numbers = #tpu.dot_dimension_numbers<[1], [0], [0], [1], [0, 0, 1, 1], [], []>} : vector<4x4xbf16>, vector<4x4xbf16>, vector<4x4xf32> -> vector<4x4xf32>
    %151 = arith.truncf %150 : vector<4x4xf32> to vector<4x4xbf16>
    %c0_79 = arith.constant 0 : index
    %c28_80 = arith.constant 28 : index
    %152 = vector.load %arg8[%c0_79, %c28_80] : memref<4x32xbf16, #tpu.memory_space<vmem>>, vector<4x4xbf16>
    tpu.vector_store %arg8[%c0_79, %c28_80], %151 {strides = array<i32>} : memref<4x32xbf16, #tpu.memory_space<vmem>>, vector<4x4xbf16>,
    %c0_81 = arith.constant 0 : index
    %c0_82 = arith.constant 0 : index
    %153 = vector.load %arg8[%c0_81, %c0_82] : memref<4x32xbf16, #tpu.memory_space<vmem>>, vector<4x32xbf16>
    %c0_83 = arith.constant 0 : index
    %c0_84 = arith.constant 0 : index
    %154 = vector.load %arg4[%c0_83, %c0_84] : memref<32x32xbf16, #tpu.memory_space<vmem>>, vector<32x32xbf16>
    %cst_85 = arith.constant dense<0.000000e+00> : vector<4x32xf32>
    %155 = tpu.matmul %153, %154, %cst_85 {dimension_numbers = #tpu.dot_dimension_numbers<[1], [0], [0], [1], [0, 0, 1, 1], [], []>} : vector<4x32xbf16>, vector<32x32xbf16>, vector<4x32xf32> -> vector<4x32xf32>
    %c0_86 = arith.constant 0 : index
    %c0_87 = arith.constant 0 : index
    %156 = vector.load %arg5[%c0_86, %c0_87] : memref<1x32xf32, #tpu.memory_space<vmem>>, vector<1x32xf32>
    %157 = vector.broadcast %156 : vector<1x32xf32> to vector<4x32xf32>
    %158 = arith.addf %155, %157 : vector<4x32xf32>
    %c0_88 = arith.constant 0 : index
    %c0_89 = arith.constant 0 : index
    %c0_90 = arith.constant 0 : index
    %159 = vector.load %arg6[%c0_88, %c0_89, %c0_90] : memref<1x4x32xf32, #tpu.memory_space<vmem>>, vector<1x4x32xf32>
    %160 = vector.shape_cast %159 : vector<1x4x32xf32> to vector<4x32xf32>
    %161 = vector.shape_cast %158 : vector<4x32xf32> to vector<1x4x32xf32>
    tpu.vector_store %arg6[%c0_88, %c0_89, %c0_90], %161 {strides = array<i32>} : memref<1x4x32xf32, #tpu.memory_space<vmem>>, vector<1x4x32xf32>,
    return
  }
  func.func @transform_0(%arg0: i32) -> (i32, i32, i32) {
    %c0_i32 = arith.constant 0 : i32
    %c0_i32_0 = arith.constant 0 : i32
    %c0_i32_1 = arith.constant 0 : i32
    return %arg0, %c0_i32, %c0_i32_0 : i32, i32, i32
  }
  func.func @transform_1(%arg0: i32) -> (i32, i32) {
    %c0_i32 = arith.constant 0 : i32
    %c0_i32_0 = arith.constant 0 : i32
    %c0_i32_1 = arith.constant 0 : i32
    return %c0_i32, %c0_i32_0 : i32, i32
  }
  func.func @transform_2(%arg0: i32) -> (i32, i32) {
    %c0_i32 = arith.constant 0 : i32
    %c0_i32_0 = arith.constant 0 : i32
    %c0_i32_1 = arith.constant 0 : i32
    return %c0_i32, %c0_i32_0 : i32, i32
  }
  func.func @transform_3(%arg0: i32) -> (i32, i32) {
    %c0_i32 = arith.constant 0 : i32
    %c0_i32_0 = arith.constant 0 : i32
    %c0_i32_1 = arith.constant 0 : i32
    return %c0_i32, %c0_i32_0 : i32, i32
  }
  func.func @transform_4(%arg0: i32) -> (i32, i32) {
    %c0_i32 = arith.constant 0 : i32
    %c0_i32_0 = arith.constant 0 : i32
    %c0_i32_1 = arith.constant 0 : i32
    return %c0_i32, %c0_i32_0 : i32, i32
  }
  func.func @transform_5(%arg0: i32) -> (i32, i32, i32) {
    %c0_i32 = arith.constant 0 : i32
    %c0_i32_0 = arith.constant 0 : i32
    %c0_i32_1 = arith.constant 0 : i32
    return %arg0, %c0_i32, %c0_i32_0 : i32, i32, i32
  }
}

</mosaic_0001>

<llo_original>
// kernel: tpu_custom_call.1
$region0: #{tpu_custom_call.1}
  #allocation0 [shape = 'u32[]', space=smem, size = 0x4, offset = 0x4, fixed_abs, tag = 'smem constant byte address 0x4 - core index']
  #allocation1 [shape = 'u32[144,128]{1,0:T(1,128)}', space=vmem, size = 0x12000, scoped, tag = 'internal scratch']
  #allocation2 [shape = 'bf16[4,96]{1,0:T(4,128)(2,1)}', space=vmem, size = 0x400, scoped, tag = 'scratch operand']
  #allocation3 [shape = 'bf16[4,32]{1,0:T(4,128)(2,1)}', space=vmem, size = 0x400, scoped, tag = 'scratch operand']
  %s0 = inlined_call_operand.hbm [shape: bf16[2,4,32], index: 0, kind: input, shape index: {}]
  %s1 = inlined_call_operand.hbm [shape: bf16[32,96], index: 1, kind: input, shape index: {}]
  %s2 = inlined_call_operand.hbm [shape: f32[1,96], index: 2, kind: input, shape index: {}]
  %s3 = inlined_call_operand.hbm [shape: bf16[32,32], index: 3, kind: input, shape index: {}]
  %s4 = inlined_call_operand.hbm [shape: f32[1,32], index: 4, kind: input, shape index: {}]
  %s5 = inlined_call_operand.hbm [shape: f32[2,4,32], index: 5, kind: output, shape index: {}]
  %s6 = sld [smem:[#allocation0]]
  $region73: #{tpu_custom_call.1} parent=0
    _
  %s8 = ssub.s32 1, %s6
  %s9 = scalar_select 0, %s8, %s6
  $region1: #{tpu_custom_call.1} parent=0
    #allocation4 [shape = 'u8[2048]{0}', space=vmem, size = 0x800, scoped, tag = 'input window, operand 0']
    #allocation5 [shape = 's32[2]{0}', space=sflag, size = 0x8, scoped, tag = 'scoped memory for tpu_custom_call.1']
    #allocation6 [shape = 's32[2]{0}', space=sflag, size = 0x8, scoped, tag = 'scoped memory for tpu_custom_call.1']
    #allocation7 [shape = 'u8[8192]{0}', space=vmem, size = 0x2000, scoped, tag = 'input window, operand 1, single buffered']
    #allocation8 [shape = 's32[1]{0}', space=sflag, size = 0x4, scoped, tag = 'scoped memory for tpu_custom_call.1']
    #allocation9 [shape = 'u8[512]{0}', space=vmem, size = 0x400, scoped, tag = 'input window, operand 2, single buffered']
    #allocation10 [shape = 'u8[8192]{0}', space=vmem, size = 0x2000, scoped, tag = 'input window, operand 3, single buffered']
    #allocation11 [shape = 's32[1]{0}', space=sflag, size = 0x4, scoped, tag = 'scoped memory for tpu_custom_call.1']
    #allocation12 [shape = 'u8[512]{0}', space=vmem, size = 0x400, scoped, tag = 'input window, operand 4, single buffered']
    #allocation13 [shape = 'u8[4096]{0}', space=vmem, size = 0x1000, scoped, tag = 'output window, operand 0']
    %10 = vsyncpa [#allocation5], 0
    %s11 = scalar_lea.sflag [#allocation5], 1
    %12 = vsyncpa %s11, 0
    %13 = vsyncpa [#allocation8], 0
    %14 = vsyncpa [#allocation11], 0
    %15 = vsyncpa [#allocation6], 0
    %s16 = scalar_lea.sflag [#allocation6], 1
    %17 = vsyncpa %s16, 0
    loop: start=0, step=1, limit=4
    $region2: #{tpu_custom_call.1} parent=1 // loop_pre_header
      _
    $region3: #{tpu_custom_call.1} parent=1 // loop_header
      %s19 = sphi 0, %s23
      %p20 = scmp.ge.s32.totalorder %s19, 4
      %s29 = sphi 0, %s31
      %s32 = sphi 0, %s29
      %s33 = sphi 0, %s32
      %s49 = sphi 0, %s33
      %s53 = sphi 0, %s53
      %s55 = sphi 0, %s53
      %s56 = sphi 0, %s55
      %s70 = sphi 0, %s56
      %s74 = sphi 0, %s74
      %s76 = sphi 0, %s74
      %s77 = sphi 0, %s76
      %s91 = sphi 0, %s77
      %s95 = sphi 0, %s95
      %s97 = sphi 0, %s95
      %s98 = sphi 0, %s97
      %s112 = sphi 0, %s98
      %s116 = sphi 0, %s116
      %s118 = sphi 0, %s116
      %s119 = sphi 0, %s118
      %s133 = sphi 0, %s119
      %s139 = sphi 0, %s141
      %s142 = sphi 0, %s139
      %s143 = sphi 0, %s142
      %s159 = sphi 0, %s143
    $region4: #{tpu_custom_call.1} parent=1 // loop_header_branch
      %22 = sbr.rel (%p20) target = $region8
    $region5: #{tpu_custom_call.1} parent=1 // loop_body
      %s24 = ssub.s32 %s19, 1
      %s25 = ssub.s32 %s19, 2
      %s26 = sadd.s32 %s19, 1
      %s27 = ssub.s32 %s19, %s26
      %p28 = scmp.eq.s32.totalorder %s27, 0
      %s30 = sadd.s32 %s29, 1
      %s31 = scalar_select %p28, %s29, %s30
      %p34 = pneg %p28
      %p35 = scmp.eq.s32.totalorder %s19, 1
      %p36 = por %p34, %p35
      %p37 = scmp.ne.s32.totalorder %s29, %s32
      %p38 = scmp.eq.s32.totalorder %s19, 0
      %p39 = por %p37, %p38
      %p40 = scmp.ne.s32.totalorder %s29, %s32
      %p41 = scmp.eq.s32.totalorder %s24, 1
      %p42 = por %p40, %p41
      %p43 = scmp.ne.s32.totalorder %s32, %s33
      %p44 = scmp.eq.s32.totalorder %s24, 0
      %p45 = por %p43, %p44
      %p46 = scmp.ne.s32.totalorder %s32, %s33
      %p47 = scmp.eq.s32.totalorder %s25, 1
      %p48 = por %p46, %p47
      %p50 = scmp.ne.s32.totalorder %s33, %s49
      %p51 = scmp.eq.s32.totalorder %s25, 0
      %p52 = por %p50, %p51
      %s54 = sadd.s32 %s53, 1
      %p57 = scmp.eq.s32.totalorder %s19, 1
      %p58 = scmp.ne.s32.totalorder %s53, %s55
      %p59 = scmp.eq.s32.totalorder %s19, 0
      %p60 = por %p58, %p59
      %p61 = scmp.ne.s32.totalorder %s53, %s55
      %p62 = scmp.eq.s32.totalorder %s24, 1
      %p63 = por %p61, %p62
      %p64 = scmp.ne.s32.totalorder %s55, %s56
      %p65 = scmp.eq.s32.totalorder %s24, 0
      %p66 = por %p64, %p65
      %p67 = scmp.ne.s32.totalorder %s55, %s56
      %p68 = scmp.eq.s32.totalorder %s25, 1
      %p69 = por %p67, %p68
      %p71 = scmp.ne.s32.totalorder %s56, %s70
      %p72 = scmp.eq.s32.totalorder %s25, 0
      %p73 = por %p71, %p72
      %s75 = sadd.s32 %s74, 1
      %p78 = scmp.eq.s32.totalorder %s19, 1
      %p79 = scmp.ne.s32.totalorder %s74, %s76
      %p80 = scmp.eq.s32.totalorder %s19, 0
      %p81 = por %p79, %p80
      %p82 = scmp.ne.s32.totalorder %s74, %s76
      %p83 = scmp.eq.s32.totalorder %s24, 1
      %p84 = por %p82, %p83
      %p85 = scmp.ne.s32.totalorder %s76, %s77
      %p86 = scmp.eq.s32.totalorder %s24, 0
      %p87 = por %p85, %p86
      %p88 = scmp.ne.s32.totalorder %s76, %s77
      %p89 = scmp.eq.s32.totalorder %s25, 1
      %p90 = por %p88, %p89
      %p92 = scmp.ne.s32.totalorder %s77, %s91
      %p93 = scmp.eq.s32.totalorder %s25, 0
      %p94 = por %p92, %p93
      %s96 = sadd.s32 %s95, 1
      %p99 = scmp.eq.s32.totalorder %s19, 1
      %p100 = scmp.ne.s32.totalorder %s95, %s97
      %p101 = scmp.eq.s32.totalorder %s19, 0
      %p102 = por %p100, %p101
      %p103 = scmp.ne.s32.totalorder %s95, %s97
      %p104 = scmp.eq.s32.totalorder %s24, 1
      %p105 = por %p103, %p104
      %p106 = scmp.ne.s32.totalorder %s97, %s98
      %p107 = scmp.eq.s32.totalorder %s24, 0
      %p108 = por %p106, %p107
      %p109 = scmp.ne.s32.totalorder %s97, %s98
      %p110 = scmp.eq.s32.totalorder %s25, 1
      %p111 = por %p109, %p110
      %p113 = scmp.ne.s32.totalorder %s98, %s112
      %p114 = scmp.eq.s32.totalorder %s25, 0
      %p115 = por %p113, %p114
      %s117 = sadd.s32 %s116, 1
      %p120 = scmp.eq.s32.totalorder %s19, 1
      %p121 = scmp.ne.s32.totalorder %s116, %s118
      %p122 = scmp.eq.s32.totalorder %s19, 0
      %p123 = por %p121, %p122
      %p124 = scmp.ne.s32.totalorder %s116, %s118
      %p125 = scmp.eq.s32.totalorder %s24, 1
      %p126 = por %p124, %p125
      %p127 = scmp.ne.s32.totalorder %s118, %s119
      %p128 = scmp.eq.s32.totalorder %s24, 0
      %p129 = por %p127, %p128
      %p130 = scmp.ne.s32.totalorder %s118, %s119
      %p131 = scmp.eq.s32.totalorder %s25, 1
      %p132 = por %p130, %p131
      %p134 = scmp.ne.s32.totalorder %s119, %s133
      %p135 = scmp.eq.s32.totalorder %s25, 0
      %p136 = por %p134, %p135
      %s137 = ssub.s32 %s19, %s26
      %p138 = scmp.eq.s32.totalorder %s137, 0
      %s140 = sadd.s32 %s139, 1
      %s141 = scalar_select %p138, %s139, %s140
      %p144 = pneg %p138
      %p145 = scmp.eq.s32.totalorder %s19, 1
      %p146 = por %p144, %p145
      %p147 = scmp.ne.s32.totalorder %s139, %s142
      %p148 = scmp.eq.s32.totalorder %s19, 0
      %p149 = por %p147, %p148
      %p150 = scmp.ne.s32.totalorder %s139, %s142
      %p151 = scmp.eq.s32.totalorder %s24, 1
      %p152 = por %p150, %p151
      %p153 = scmp.ne.s32.totalorder %s142, %s143
      %p154 = scmp.eq.s32.totalorder %s24, 0
      %p155 = por %p153, %p154
      %p156 = scmp.ne.s32.totalorder %s142, %s143
      %p157 = scmp.eq.s32.totalorder %s25, 1
      %p158 = por %p156, %p157
      %p160 = scmp.ne.s32.totalorder %s143, %s159
      %p161 = scmp.eq.s32.totalorder %s25, 0
      %p162 = por %p160, %p161
      %p163 = scmp.le.s32.totalorder 1, %s19
      %p164 = scmp.lt.s32.totalorder %s19, 3
      %p165 = pnand %p163, %p164
      %p166 = pneg %p165
      // Predicated region
      $region9: #{tpu_custom_call.1} parent=5 // pred_check
        _
      $region10: #{tpu_custom_call.1} parent=5 // pred_check_branch
        %168 = sbr.rel (%p165) target = $region12
      $region11: #{tpu_custom_call.1} parent=5 // pred_region
        %s169 = ssub.s32 %s19, 1
        // Predicated region
        $region13: #{tpu_custom_call.1} parent=11 // pred_check
          %p170 = pneg %p66
        $region14: #{tpu_custom_call.1} parent=11 // pred_check_branch
          %172 = sbr.rel (%p170) target = $region16
        $region15: #{tpu_custom_call.1} parent=11 // pred_region
          %s174 = ssub.s32 256, 256
          %175 = vsyncadd [#allocation8], %s174
          %s176 = sshll.u32 [#allocation7], 4
          %s177 = int_to_ptr.vmem [resolvable:$true] %s176
          %182 = dma.hbm_to_vmem [thread:$0]  %s1, 256, %s177, [#allocation8], 64, 64, 4
        $region16: #{tpu_custom_call.1} parent=11 // pred_fallthru
          _
        // Predicated region
        $region17: #{tpu_custom_call.1} parent=11 // pred_check
          %p183 = pneg %p87
        $region18: #{tpu_custom_call.1} parent=11 // pred_check_branch
          %185 = sbr.rel (%p183) target = $region20
        $region19: #{tpu_custom_call.1} parent=11 // pred_region
          %s187 = ssub.s32 16, 16
          %188 = vsyncadd [#allocation8], %s187
          %s190 = sshll.u32 [#allocation9], 4
          %s191 = int_to_ptr.vmem [resolvable:$true] %s190
          %193 = dma.hbm_to_vmem [thread:$0]  %s2, 16, %s191, [#allocation8]
        $region20: #{tpu_custom_call.1} parent=11 // pred_fallthru
          _
        // Predicated region
        $region21: #{tpu_custom_call.1} parent=11 // pred_check
          %p194 = pneg %p108
        $region22: #{tpu_custom_call.1} parent=11 // pred_check_branch
          %196 = sbr.rel (%p194) target = $region24
        $region23: #{tpu_custom_call.1} parent=11 // pred_region
          %s198 = ssub.s32 256, 256
          %199 = vsyncadd [#allocation11], %s198
          %s200 = sshll.u32 [#allocation10], 4
          %s201 = int_to_ptr.vmem [resolvable:$true] %s200
          %206 = dma.hbm_to_vmem [thread:$0]  %s3, 256, %s201, [#allocation11], 64, 64, 4
        $region24: #{tpu_custom_call.1} parent=11 // pred_fallthru
          _
        // Predicated region
        $region25: #{tpu_custom_call.1} parent=11 // pred_check
          %p207 = pneg %p129
        $region26: #{tpu_custom_call.1} parent=11 // pred_check_branch
          %209 = sbr.rel (%p207) target = $region28
        $region27: #{tpu_custom_call.1} parent=11 // pred_region
          %s211 = ssub.s32 16, 16
          %212 = vsyncadd [#allocation11], %s211
          %s214 = sshll.u32 [#allocation12], 4
          %s215 = int_to_ptr.vmem [resolvable:$true] %s214
          %217 = dma.hbm_to_vmem [thread:$0]  %s4, 16, %s215, [#allocation11]
        $region28: #{tpu_custom_call.1} parent=11 // pred_fallthru
          _
      $region12: #{tpu_custom_call.1} parent=5 // pred_fallthru
        _
      %p218 = scmp.lt.s32.totalorder %s19, 2
      // Predicated region
      $region29: #{tpu_custom_call.1} parent=5 // pred_check
        %p219 = pneg %p218
      $region30: #{tpu_custom_call.1} parent=5 // pred_check_branch
        %221 = sbr.rel (%p219) target = $region32
      $region31: #{tpu_custom_call.1} parent=5 // pred_region
        // Predicated region
        $region33: #{tpu_custom_call.1} parent=31 // pred_check
          %p222 = pneg %p39
        $region34: #{tpu_custom_call.1} parent=31 // pred_check_branch
          %224 = sbr.rel (%p222) target = $region36
        $region35: #{tpu_custom_call.1} parent=31 // pred_region
          %s225 = sand.u32 %s29, 1
          %s226 = scalar_lea.sflag [#allocation5], %s225
          %s227 = sand.u32 %s29, 1
          %s228 = smul.addr %s227, 2
          %s229 = scalar_lea.vmem [#allocation4], %s228
          %s231 = ssub.s32 32, 32
          %232 = vsyncadd %s226, %s231
          %s233 = smul.addr %s19, 32
          %s234 = scalar_lea.hbm %s0, %s233
          %s236 = sshll.u32 %s229, 4
          %s237 = int_to_ptr.vmem [resolvable:$true] %s236
          %239 = dma.hbm_to_vmem [thread:$0]  %s234, 32, %s237, %s226
        $region36: #{tpu_custom_call.1} parent=31 // pred_fallthru
          _
      $region32: #{tpu_custom_call.1} parent=5 // pred_fallthru
        _
      %p240 = scmp.le.s32.totalorder 1, %s19
      %p241 = scmp.lt.s32.totalorder %s19, 3
      %p242 = pnand %p240, %p241
      %p243 = pneg %p242
      // Predicated region
      $region37: #{tpu_custom_call.1} parent=5 // pred_check
        _
      $region38: #{tpu_custom_call.1} parent=5 // pred_check_branch
        %245 = sbr.rel (%p242) target = $region40
      $region39: #{tpu_custom_call.1} parent=5 // pred_region
        %s246 = ssub.s32 %s19, 1
        %s247 = sand.u32 %s32, 1
        %s248 = scalar_lea.sflag [#allocation5], %s247
        %s249 = sand.u32 %s32, 1
        %s250 = smul.addr %s249, 2
        %s251 = scalar_lea.vmem [#allocation4], %s250
        // Predicated region
        $region41: #{tpu_custom_call.1} parent=39 // pred_check
          %p252 = pneg %p45
        $region42: #{tpu_custom_call.1} parent=39 // pred_check_branch
          %254 = sbr.rel (%p252) target = $region44
        $region43: #{tpu_custom_call.1} parent=39 // pred_region
          %255 = dma.done %s248, 32
        $region44: #{tpu_custom_call.1} parent=39 // pred_fallthru
          _
        // Predicated region
        $region45: #{tpu_custom_call.1} parent=39 // pred_check
          %p256 = pneg %p66
        $region46: #{tpu_custom_call.1} parent=39 // pred_check_branch
          %258 = sbr.rel (%p256) target = $region48
        $region47: #{tpu_custom_call.1} parent=39 // pred_region
          %259 = dma.done [#allocation8], 256
        $region48: #{tpu_custom_call.1} parent=39 // pred_fallthru
          _
        // Predicated region
        $region49: #{tpu_custom_call.1} parent=39 // pred_check
          %p260 = pneg %p87
        $region50: #{tpu_custom_call.1} parent=39 // pred_check_branch
          %262 = sbr.rel (%p260) target = $region52
        $region51: #{tpu_custom_call.1} parent=39 // pred_region
          %263 = dma.done [#allocation8], 16
        $region52: #{tpu_custom_call.1} parent=39 // pred_fallthru
          _
        // Predicated region
        $region53: #{tpu_custom_call.1} parent=39 // pred_check
          %p264 = pneg %p108
        $region54: #{tpu_custom_call.1} parent=39 // pred_check_branch
          %266 = sbr.rel (%p264) target = $region56
        $region55: #{tpu_custom_call.1} parent=39 // pred_region
          %267 = dma.done [#allocation11], 256
        $region56: #{tpu_custom_call.1} parent=39 // pred_fallthru
          _
        // Predicated region
        $region57: #{tpu_custom_call.1} parent=39 // pred_check
          %p268 = pneg %p129
        $region58: #{tpu_custom_call.1} parent=39 // pred_check_branch
          %270 = sbr.rel (%p268) target = $region60
        $region59: #{tpu_custom_call.1} parent=39 // pred_region
          %271 = dma.done [#allocation11], 16
        $region60: #{tpu_custom_call.1} parent=39 // pred_fallthru
          _
        %s272 = sand.u32 %s32, 1
        %s273 = scalar_lea.sflag [#allocation5], %s272
        %s274 = sand.u32 %s32, 1
        %s275 = smul.addr %s274, 2
        %s276 = scalar_lea.vmem [#allocation4], %s275
        %p277 = pneg %p45
        %p278 = pneg %p42
        %p279 = pneg %p66
        %p280 = pneg %p63
        %p281 = pneg %p87
        %p282 = pneg %p84
        %p283 = pneg %p108
        %p284 = pneg %p105
        %p285 = pneg %p129
        %p286 = pneg %p126
        %p287 = pneg %p155
        %p288 = pneg %p152
        %s289 = sand.u32 %s142, 1
        %s290 = scalar_lea.sflag [#allocation6], %s289
        %s291 = sand.u32 %s142, 1
        %s292 = smul.addr %s291, 4
        %s293 = scalar_lea.vmem [#allocation13], %s292
        %v295 = vld [vmem:[%s251] sm:$0x3]
        %v296 = vld [vmem:[#allocation7] sm:$0xf]
        %v297 = vld [vmem:[#allocation7 + $0x4] sm:$0xf]
        %v298 = vld [vmem:[#allocation7 + $0x8] sm:$0xf]
        %v299 = vld [vmem:[#allocation7 + $0xc] sm:$0xf]
        %v300 = vld [vmem:[#allocation9] sm:$0x1]
        %v302 = vlaneseq
        %v303 = vshrl.u32 %v302, 7
        %v304 = vsub.s32 0, %v303
        %v305 = vrot.slane %v300, %v304
        %v311 = vunpack.c.l.b16 %v296
        %v312 = vunpack.c.l.b16 %v297
        %v313 = vunpack.c.l.b16 %v298
        %v314 = vunpack.c.l.b16 %v299
        %v315 = vpack.c.b16 %v312, %v311
        %v316 = vpack.c.b16 %v314, %v313
        %vm319 = vcmask 261120
        %v321 = vsel %vm319, %v295, 0
        %323 = vmatprep.subr.bf16.mxu0 0
        %324 = vmatpush1.bf16.msra.mxu0 %v315
        %325 = vmatprep.subr.bf16.mxu0 0
        %326 = vmatpush1.bf16.msra.mxu0 %v316
        %327 = vmatprep.subr.bf16.mxu0 0
        %328 = vmatpush1.bf16.msra.mxu0 0
        %329 = vmatprep.subr.bf16.mxu0 0
        %330 = vmatpush1.bf16.msra.mxu0 0
        %331 = vmatprep.subr.bf16.mxu0 0
        %332 = vmatpush1.bf16.msra.mxu0 0
        %333 = vmatprep.subr.bf16.mxu0 0
        %334 = vmatpush1.bf16.msra.mxu0 0
        %335 = vmatprep.subr.bf16.mxu0 0
        %336 = vmatpush1.bf16.msra.mxu0 0
        %337 = vmatprep.subr.bf16.mxu0 0
        %338 = vmatpush1.bf16.msra.mxu0 0
        %339 = vmatprep.subr.bf16.mxu0 0
        %340 = vmatpush1.bf16.msra.mxu0 0
        %341 = vmatprep.subr.bf16.mxu0 0
        %342 = vmatpush1.bf16.msra.mxu0 0
        %343 = vmatprep.subr.bf16.mxu0 0
        %344 = vmatpush1.bf16.msra.mxu0 0
        %345 = vmatprep.subr.bf16.mxu0 0
        %346 = vmatpush1.bf16.msra.mxu0 0
        %347 = vmatprep.subr.bf16.mxu0 0
        %348 = vmatpush1.bf16.msra.mxu0 0
        %349 = vmatprep.subr.bf16.mxu0 0
        %350 = vmatpush1.bf16.msra.mxu0 0
        %351 = vmatprep.subr.bf16.mxu0 0
        %352 = vmatpush1.bf16.msra.mxu0 0
        %353 = vmatprep.subr.bf16.mxu0 0
        %354 = vmatpush1.bf16.msra.mxu0 0
        %355 = vmatprep.mubr.bf16.mxu0 0
        %356 = vmatmul.mubr.bf16.gmra.mrb[0].mxu0 %v321
        %v357 = vpop.f32.mrb[0].mxu0
        %v358 = vadd.f32 %v305, %v357
        %v359 = vpop.f32.mrb[0].mxu0
        %v360 = vpop.f32.mrb[0].mxu0
        %v361 = vpop.f32.mrb[0].mxu0
        %362 = vdwg.mxu0
        %v363 = vpack.c.bf16 %v358, %v358
        %vm364 = vcmask 779264
        %365 = vst.msk [vmem:[#allocation2] sm:$0x3] %vm364, %v363
        %v366 = vld [vmem:[#allocation2] sm:$0x3]
        %v369 = vunpack.c.l.s4 1983009808
        %v370 = vunpack.c.0.s8 %v369
        %v371 = vlaneseq
        %v372 = vshrl.u32 %v371, 7
        %v373 = vsub.s32 %v370, %v372
        %v374 = vrot.slane %v366, %v373
        %375 = vrot.lane.b32.xlu0 %v374, 96
        %v376 = vpop.permute.xlu0 %375
        %vm377 = vcmask 31744
        %v379 = vsel %vm377, %v366, 0
        %v382 = vsel %vm377, %v376, 0
        %384 = vmatprep.subr.bf16.mxu0 0
        %385 = vmatpush1.bf16.xpose.msra.mxu0 %v382
        %386 = vmatprep.subr.bf16.mxu0 0
        %387 = vmatpush1.bf16.xpose.msra.mxu0 0
        %388 = vmatprep.subr.bf16.mxu0 0
        %389 = vmatpush1.bf16.xpose.msra.mxu0 0
        %390 = vmatprep.subr.bf16.mxu0 0
        %391 = vmatpush1.bf16.xpose.msra.mxu0 0
        %392 = vmatprep.subr.bf16.mxu0 0
        %393 = vmatpush1.bf16.xpose.msra.mxu0 0
        %394 = vmatprep.subr.bf16.mxu0 0
        %395 = vmatpush1.bf16.xpose.msra.mxu0 0
        %396 = vmatprep.subr.bf16.mxu0 0
        %397 = vmatpush1.bf16.xpose.msra.mxu0 0
        %398 = vmatprep.subr.bf16.mxu0 0
        %399 = vmatpush1.bf16.xpose.msra.mxu0 0
        %400 = vmatprep.subr.bf16.mxu0 0
        %401 = vmatpush1.bf16.xpose.msra.mxu0 0
        %402 = vmatprep.subr.bf16.mxu0 0
        %403 = vmatpush1.bf16.xpose.msra.mxu0 0
        %404 = vmatprep.subr.bf16.mxu0 0
        %405 = vmatpush1.bf16.xpose.msra.mxu0 0
        %406 = vmatprep.subr.bf16.mxu0 0
        %407 = vmatpush1.bf16.xpose.msra.mxu0 0
        %408 = vmatprep.subr.bf16.mxu0 0
        %409 = vmatpush1.bf16.xpose.msra.mxu0 0
        %410 = vmatprep.subr.bf16.mxu0 0
        %411 = vmatpush1.bf16.xpose.msra.mxu0 0
        %412 = vmatprep.subr.bf16.mxu0 0
        %413 = vmatpush1.bf16.xpose.msra.mxu0 0
        %414 = vmatprep.subr.bf16.mxu0 0
        %415 = vmatpush1.bf16.xpose.msra.mxu0 0
        %416 = vmatprep.mubr.bf16.mxu0 0
        %417 = vmatmul.mubr.bf16.gmra.mrb[0].mxu0 %v379
        %v418 = vpop.f32.mrb[0].mxu0
        %v419 = vadd.f32 0.0, %v418
        %v420 = vpop.f32.mrb[0].mxu0
        %v421 = vpop.f32.mrb[0].mxu0
        %v422 = vpop.f32.mrb[0].mxu0
        %423 = vdwg.mxu0
        %vm424 = vcmask 27648
        %v425 = vsel %vm424, %v419, -inf
        %426 = vmax.xlane.f32.xlu0 %v425
        %v427 = vpop.xlane.xlu0 %426
        %v428 = vsub.f32 %v419, %v427
        %v429 = vmul.f32 %v428, 1.442695
        %v430 = vpow.pop %v429
        %v431 = vsel %vm424, %v430, 0.0
        %432 = vadd.xlane.f32.xlu0 %v431
        %v433 = vpop.xlane.xlu0 %432
        %v434 = vrcp.pop %v433
        %v435 = vmul.f32 %v430, %v434
        %v436 = vpack.c.bf16 %v435, %v435
        %437 = vrot.lane.b32.xlu0 %v374, 64
        %v438 = vpop.permute.xlu0 %437
        %v440 = vsel %vm377, %v436, 0
        %vm442 = vcmask 1041408
        %v444 = vsel %vm442, %v438, 0
        %446 = vmatprep.subr.bf16.mxu0 0
        %447 = vmatpush1.bf16.msra.mxu0 %v444
        %448 = vmatprep.subr.bf16.mxu0 0
        %449 = vmatpush1.bf16.msra.mxu0 0
        %450 = vmatprep.subr.bf16.mxu0 0
        %451 = vmatpush1.bf16.msra.mxu0 0
        %452 = vmatprep.subr.bf16.mxu0 0
        %453 = vmatpush1.bf16.msra.mxu0 0
        %454 = vmatprep.subr.bf16.mxu0 0
        %455 = vmatpush1.bf16.msra.mxu0 0
        %456 = vmatprep.subr.bf16.mxu0 0
        %457 = vmatpush1.bf16.msra.mxu0 0
        %458 = vmatprep.subr.bf16.mxu0 0
        %459 = vmatpush1.bf16.msra.mxu0 0
        %460 = vmatprep.subr.bf16.mxu0 0
        %461 = vmatpush1.bf16.msra.mxu0 0
        %462 = vmatprep.subr.bf16.mxu0 0
        %463 = vmatpush1.bf16.msra.mxu0 0
        %464 = vmatprep.subr.bf16.mxu0 0
        %465 = vmatpush1.bf16.msra.mxu0 0
        %466 = vmatprep.subr.bf16.mxu0 0
        %467 = vmatpush1.bf16.msra.mxu0 0
        %468 = vmatprep.subr.bf16.mxu0 0
        %469 = vmatpush1.bf16.msra.mxu0 0
        %470 = vmatprep.subr.bf16.mxu0 0
        %471 = vmatpush1.bf16.msra.mxu0 0
        %472 = vmatprep.subr.bf16.mxu0 0
        %473 = vmatpush1.bf16.msra.mxu0 0
        %474 = vmatprep.subr.bf16.mxu0 0
        %475 = vmatpush1.bf16.msra.mxu0 0
        %476 = vmatprep.subr.bf16.mxu0 0
        %477 = vmatpush1.bf16.msra.mxu0 0
        %478 = vmatprep.mubr.bf16.mxu0 0
        %479 = vmatmul.mubr.bf16.gmra.mrb[0].mxu0 %v440
        %v480 = vpop.f32.mrb[0].mxu0
        %v481 = vadd.f32 0.0, %v480
        %v482 = vpop.f32.mrb[0].mxu0
        %v483 = vpop.f32.mrb[0].mxu0
        %v484 = vpop.f32.mrb[0].mxu0
        %485 = vdwg.mxu0
        %v486 = vpack.c.bf16 %v481, %v481
        %vm487 = vcmask 25600
        %488 = vst.msk [vmem:[#allocation3] sm:$0x3] %vm487, %v486
        %v489 = vld [vmem:[#allocation2] sm:$0x3]
        %v492 = vunpack.c.l.s4 1983009808
        %v493 = vunpack.c.0.s8 %v492
        %v494 = vlaneseq
        %v495 = vshrl.u32 %v494, 7
        %v496 = vsub.s32 %v493, %v495
        %v497 = vrot.slane %v489, %v496
        %498 = vrot.lane.b32.xlu0 %v497, 124
        %v499 = vpop.permute.xlu0 %498
        %500 = vrot.lane.b32.xlu0 %v497, 92
        %v501 = vpop.permute.xlu0 %500
        %v503 = vsel %vm377, %v499, 0
        %v506 = vsel %vm377, %v501, 0
        %508 = vmatprep.subr.bf16.mxu0 0
        %509 = vmatpush1.bf16.xpose.msra.mxu0 %v506
        %510 = vmatprep.subr.bf16.mxu0 0
        %511 = vmatpush1.bf16.xpose.msra.mxu0 0
        %512 = vmatprep.subr.bf16.mxu0 0
        %513 = vmatpush1.bf16.xpose.msra.mxu0 0
        %514 = vmatprep.subr.bf16.mxu0 0
        %515 = vmatpush1.bf16.xpose.msra.mxu0 0
        %516 = vmatprep.subr.bf16.mxu0 0
        %517 = vmatpush1.bf16.xpose.msra.mxu0 0
        %518 = vmatprep.subr.bf16.mxu0 0
        %519 = vmatpush1.bf16.xpose.msra.mxu0 0
        %520 = vmatprep.subr.bf16.mxu0 0
        %521 = vmatpush1.bf16.xpose.msra.mxu0 0
        %522 = vmatprep.subr.bf16.mxu0 0
        %523 = vmatpush1.bf16.xpose.msra.mxu0 0
        %524 = vmatprep.subr.bf16.mxu0 0
        %525 = vmatpush1.bf16.xpose.msra.mxu0 0
        %526 = vmatprep.subr.bf16.mxu0 0
        %527 = vmatpush1.bf16.xpose.msra.mxu0 0
        %528 = vmatprep.subr.bf16.mxu0 0
        %529 = vmatpush1.bf16.xpose.msra.mxu0 0
        %530 = vmatprep.subr.bf16.mxu0 0
        %531 = vmatpush1.bf16.xpose.msra.mxu0 0
        %532 = vmatprep.subr.bf16.mxu0 0
        %533 = vmatpush1.bf16.xpose.msra.mxu0 0
        %534 = vmatprep.subr.bf16.mxu0 0
        %535 = vmatpush1.bf16.xpose.msra.mxu0 0
        %536 = vmatprep.subr.bf16.mxu0 0
        %537 = vmatpush1.bf16.xpose.msra.mxu0 0
        %538 = vmatprep.subr.bf16.mxu0 0
        %539 = vmatpush1.bf16.xpose.msra.mxu0 0
        %540 = vmatprep.mubr.bf16.mxu0 0
        %541 = vmatmul.mubr.bf16.gmra.mrb[0].mxu0 %v503
        %v542 = vpop.f32.mrb[0].mxu0
        %v543 = vadd.f32 0.0, %v542
        %v544 = vpop.f32.mrb[0].mxu0
        %v545 = vpop.f32.mrb[0].mxu0
        %v546 = vpop.f32.mrb[0].mxu0
        %547 = vdwg.mxu0
        %v548 = vsel %vm424, %v543, -inf
        %549 = vmax.xlane.f32.xlu0 %v548
        %v550 = vpop.xlane.xlu0 %549
        %v551 = vsub.f32 %v543, %v550
        %v552 = vmul.f32 %v551, 1.442695
        %v553 = vpow.pop %v552
        %v554 = vsel %vm424, %v553, 0.0
        %555 = vadd.xlane.f32.xlu0 %v554
        %v556 = vpop.xlane.xlu0 %555
        %v557 = vrcp.pop %v556
        %v558 = vmul.f32 %v553, %v557
        %v559 = vpack.c.bf16 %v558, %v558
        %560 = vrot.lane.b32.xlu0 %v497, 60
        %v561 = vpop.permute.xlu0 %560
        %v563 = vsel %vm377, %v559, 0
        %v566 = vsel %vm442, %v561, 0
        %568 = vmatprep.subr.bf16.mxu0 0
        %569 = vmatpush1.bf16.msra.mxu0 %v566
        %570 = vmatprep.subr.bf16.mxu0 0
        %571 = vmatpush1.bf16.msra.mxu0 0
        %572 = vmatprep.subr.bf16.mxu0 0
        %573 = vmatpush1.bf16.msra.mxu0 0
        %574 = vmatprep.subr.bf16.mxu0 0
        %575 = vmatpush1.bf16.msra.mxu0 0
        %576 = vmatprep.subr.bf16.mxu0 0
        %577 = vmatpush1.bf16.msra.mxu0 0
        %578 = vmatprep.subr.bf16.mxu0 0
        %579 = vmatpush1.bf16.msra.mxu0 0
        %580 = vmatprep.subr.bf16.mxu0 0
        %581 = vmatpush1.bf16.msra.mxu0 0
        %582 = vmatprep.subr.bf16.mxu0 0
        %583 = vmatpush1.bf16.msra.mxu0 0
        %584 = vmatprep.subr.bf16.mxu0 0
        %585 = vmatpush1.bf16.msra.mxu0 0
        %586 = vmatprep.subr.bf16.mxu0 0
        %587 = vmatpush1.bf16.msra.mxu0 0
        %588 = vmatprep.subr.bf16.mxu0 0
        %589 = vmatpush1.bf16.msra.mxu0 0
        %590 = vmatprep.subr.bf16.mxu0 0
        %591 = vmatpush1.bf16.msra.mxu0 0
        %592 = vmatprep.subr.bf16.mxu0 0
        %593 = vmatpush1.bf16.msra.mxu0 0
        %594 = vmatprep.subr.bf16.mxu0 0
        %595 = vmatpush1.bf16.msra.mxu0 0
        %596 = vmatprep.subr.bf16.mxu0 0
        %597 = vmatpush1.bf16.msra.mxu0 0
        %598 = vmatprep.subr.bf16.mxu0 0
        %599 = vmatpush1.bf16.msra.mxu0 0
        %600 = vmatprep.mubr.bf16.mxu0 0
        %601 = vmatmul.mubr.bf16.gmra.mrb[0].mxu0 %v563
        %v602 = vpop.f32.mrb[0].mxu0
        %v603 = vadd.f32 0.0, %v602
        %v604 = vpop.f32.mrb[0].mxu0
        %v605 = vpop.f32.mrb[0].mxu0
        %v606 = vpop.f32.mrb[0].mxu0
        %607 = vdwg.mxu0
        %v608 = vpack.c.bf16 %v603, %v603
        %v611 = vunpack.c.l.s4 1983009808
        %v612 = vunpack.c.0.s8 %v611
        %v613 = vlaneseq
        %v614 = vshrl.u32 %v613, 7
        %v615 = vsub.s32 %v612, %v614
        %v616 = vrot.slane %v608, %v615
        %617 = vrot.lane.b32.xlu0 %v616, 4
        %v618 = vpop.permute.xlu0 %617
        %vm620 = vcmask 58400
        %621 = vst.msk [vmem:[#allocation3] sm:$0x3] %vm620, %v618
        %v622 = vld [vmem:[#allocation2] sm:$0x3]
        %v625 = vunpack.c.l.s4 1983009808
        %v626 = vunpack.c.0.s8 %v625
        %v627 = vlaneseq
        %v628 = vshrl.u32 %v627, 7
        %v629 = vsub.s32 %v626, %v628
        %v630 = vrot.slane %v622, %v629
        %631 = vrot.lane.b32.xlu0 %v630, 120
        %v632 = vpop.permute.xlu0 %631
        %633 = vrot.lane.b32.xlu0 %v630, 88
        %v634 = vpop.permute.xlu0 %633
        %v636 = vsel %vm377, %v632, 0
        %v639 = vsel %vm377, %v634, 0
        %641 = vmatprep.subr.bf16.mxu0 0
        %642 = vmatpush1.bf16.xpose.msra.mxu0 %v639
        %643 = vmatprep.subr.bf16.mxu0 0
        %644 = vmatpush1.bf16.xpose.msra.mxu0 0
        %645 = vmatprep.subr.bf16.mxu0 0
        %646 = vmatpush1.bf16.xpose.msra.mxu0 0
        %647 = vmatprep.subr.bf16.mxu0 0
        %648 = vmatpush1.bf16.xpose.msra.mxu0 0
        %649 = vmatprep.subr.bf16.mxu0 0
        %650 = vmatpush1.bf16.xpose.msra.mxu0 0
        %651 = vmatprep.subr.bf16.mxu0 0
        %652 = vmatpush1.bf16.xpose.msra.mxu0 0
        %653 = vmatprep.subr.bf16.mxu0 0
        %654 = vmatpush1.bf16.xpose.msra.mxu0 0
        %655 = vmatprep.subr.bf16.mxu0 0
        %656 = vmatpush1.bf16.xpose.msra.mxu0 0
        %657 = vmatprep.subr.bf16.mxu0 0
        %658 = vmatpush1.bf16.xpose.msra.mxu0 0
        %659 = vmatprep.subr.bf16.mxu0 0
        %660 = vmatpush1.bf16.xpose.msra.mxu0 0
        %661 = vmatprep.subr.bf16.mxu0 0
        %662 = vmatpush1.bf16.xpose.msra.mxu0 0
        %663 = vmatprep.subr.bf16.mxu0 0
        %664 = vmatpush1.bf16.xpose.msra.mxu0 0
        %665 = vmatprep.subr.bf16.mxu0 0
        %666 = vmatpush1.bf16.xpose.msra.mxu0 0
        %667 = vmatprep.subr.bf16.mxu0 0
        %668 = vmatpush1.bf16.xpose.msra.mxu0 0
        %669 = vmatprep.subr.bf16.mxu0 0
        %670 = vmatpush1.bf16.xpose.msra.mxu0 0
        %671 = vmatprep.subr.bf16.mxu0 0
        %672 = vmatpush1.bf16.xpose.msra.mxu0 0
        %673 = vmatprep.mubr.bf16.mxu0 0
        %674 = vmatmul.mubr.bf16.gmra.mrb[0].mxu0 %v636
        %v675 = vpop.f32.mrb[0].mxu0
        %v676 = vadd.f32 0.0, %v675
        %v677 = vpop.f32.mrb[0].mxu0
        %v678 = vpop.f32.mrb[0].mxu0
        %v679 = vpop.f32.mrb[0].mxu0
        %680 = vdwg.mxu0
        %v681 = vsel %vm424, %v676, -inf
        %682 = vmax.xlane.f32.xlu0 %v681
        %v683 = vpop.xlane.xlu0 %682
        %v684 = vsub.f32 %v676, %v683
        %v685 = vmul.f32 %v684, 1.442695
        %v686 = vpow.pop %v685
        %v687 = vsel %vm424, %v686, 0.0
        %688 = vadd.xlane.f32.xlu0 %v687
        %v689 = vpop.xlane.xlu0 %688
        %v690 = vrcp.pop %v689
        %v691 = vmul.f32 %v686, %v690
        %v692 = vpack.c.bf16 %v691, %v691
        %693 = vrot.lane.b32.xlu0 %v630, 56
        %v694 = vpop.permute.xlu0 %693
        %v696 = vsel %vm377, %v692, 0
        %v699 = vsel %vm442, %v694, 0
        %701 = vmatprep.subr.bf16.mxu0 0
        %702 = vmatpush1.bf16.msra.mxu0 %v699
        %703 = vmatprep.subr.bf16.mxu0 0
        %704 = vmatpush1.bf16.msra.mxu0 0
        %705 = vmatprep.subr.bf16.mxu0 0
        %706 = vmatpush1.bf16.msra.mxu0 0
        %707 = vmatprep.subr.bf16.mxu0 0
        %708 = vmatpush1.bf16.msra.mxu0 0
        %709 = vmatprep.subr.bf16.mxu0 0
        %710 = vmatpush1.bf16.msra.mxu0 0
        %711 = vmatprep.subr.bf16.mxu0 0
        %712 = vmatpush1.bf16.msra.mxu0 0
        %713 = vmatprep.subr.bf16.mxu0 0
        %714 = vmatpush1.bf16.msra.mxu0 0
        %715 = vmatprep.subr.bf16.mxu0 0
        %716 = vmatpush1.bf16.msra.mxu0 0
        %717 = vmatprep.subr.bf16.mxu0 0
        %718 = vmatpush1.bf16.msra.mxu0 0
        %719 = vmatprep.subr.bf16.mxu0 0
        %720 = vmatpush1.bf16.msra.mxu0 0
        %721 = vmatprep.subr.bf16.mxu0 0
        %722 = vmatpush1.bf16.msra.mxu0 0
        %723 = vmatprep.subr.bf16.mxu0 0
        %724 = vmatpush1.bf16.msra.mxu0 0
        %725 = vmatprep.subr.bf16.mxu0 0
        %726 = vmatpush1.bf16.msra.mxu0 0
        %727 = vmatprep.subr.bf16.mxu0 0
        %728 = vmatpush1.bf16.msra.mxu0 0
        %729 = vmatprep.subr.bf16.mxu0 0
        %730 = vmatpush1.bf16.msra.mxu0 0
        %731 = vmatprep.subr.bf16.mxu0 0
        %732 = vmatpush1.bf16.msra.mxu0 0
        %733 = vmatprep.mubr.bf16.mxu0 0
        %734 = vmatmul.mubr.bf16.gmra.mrb[0].mxu0 %v696
        %v735 = vpop.f32.mrb[0].mxu0
        %v736 = vadd.f32 0.0, %v735
        %v737 = vpop.f32.mrb[0].mxu0
        %v738 = vpop.f32.mrb[0].mxu0
        %v739 = vpop.f32.mrb[0].mxu0
        %740 = vdwg.mxu0
        %v741 = vpack.c.bf16 %v736, %v736
        %v744 = vunpack.c.l.s4 1983009808
        %v745 = vunpack.c.0.s8 %v744
        %v746 = vlaneseq
        %v747 = vshrl.u32 %v746, 7
        %v748 = vsub.s32 %v745, %v747
        %v749 = vrot.slane %v741, %v748
        %750 = vrot.lane.b32.xlu0 %v749, 8
        %v751 = vpop.permute.xlu0 %750
        %vm753 = vcmask 91200
        %754 = vst.msk [vmem:[#allocation3] sm:$0x3] %vm753, %v751
        %v755 = vld [vmem:[#allocation2] sm:$0x3]
        %v758 = vunpack.c.l.s4 1983009808
        %v759 = vunpack.c.0.s8 %v758
        %v760 = vlaneseq
        %v761 = vshrl.u32 %v760, 7
        %v762 = vsub.s32 %v759, %v761
        %v763 = vrot.slane %v755, %v762
        %764 = vrot.lane.b32.xlu0 %v763, 116
        %v765 = vpop.permute.xlu0 %764
        %766 = vrot.lane.b32.xlu0 %v763, 84
        %v767 = vpop.permute.xlu0 %766
        %v769 = vsel %vm377, %v765, 0
        %v772 = vsel %vm377, %v767, 0
        %774 = vmatprep.subr.bf16.mxu0 0
        %775 = vmatpush1.bf16.xpose.msra.mxu0 %v772
        %776 = vmatprep.subr.bf16.mxu0 0
        %777 = vmatpush1.bf16.xpose.msra.mxu0 0
        %778 = vmatprep.subr.bf16.mxu0 0
        %779 = vmatpush1.bf16.xpose.msra.mxu0 0
        %780 = vmatprep.subr.bf16.mxu0 0
        %781 = vmatpush1.bf16.xpose.msra.mxu0 0
        %782 = vmatprep.subr.bf16.mxu0 0
        %783 = vmatpush1.bf16.xpose.msra.mxu0 0
        %784 = vmatprep.subr.bf16.mxu0 0
        %785 = vmatpush1.bf16.xpose.msra.mxu0 0
        %786 = vmatprep.subr.bf16.mxu0 0
        %787 = vmatpush1.bf16.xpose.msra.mxu0 0
        %788 = vmatprep.subr.bf16.mxu0 0
        %789 = vmatpush1.bf16.xpose.msra.mxu0 0
        %790 = vmatprep.subr.bf16.mxu0 0
        %791 = vmatpush1.bf16.xpose.msra.mxu0 0
        %792 = vmatprep.subr.bf16.mxu0 0
        %793 = vmatpush1.bf16.xpose.msra.mxu0 0
        %794 = vmatprep.subr.bf16.mxu0 0
        %795 = vmatpush1.bf16.xpose.msra.mxu0 0
        %796 = vmatprep.subr.bf16.mxu0 0
        %797 = vmatpush1.bf16.xpose.msra.mxu0 0
        %798 = vmatprep.subr.bf16.mxu0 0
        %799 = vmatpush1.bf16.xpose.msra.mxu0 0
        %800 = vmatprep.subr.bf16.mxu0 0
        %801 = vmatpush1.bf16.xpose.msra.mxu0 0
        %802 = vmatprep.subr.bf16.mxu0 0
        %803 = vmatpush1.bf16.xpose.msra.mxu0 0
        %804 = vmatprep.subr.bf16.mxu0 0
        %805 = vmatpush1.bf16.xpose.msra.mxu0 0
        %806 = vmatprep.mubr.bf16.mxu0 0
        %807 = vmatmul.mubr.bf16.gmra.mrb[0].mxu0 %v769
        %v808 = vpop.f32.mrb[0].mxu0
        %v809 = vadd.f32 0.0, %v808
        %v810 = vpop.f32.mrb[0].mxu0
        %v811 = vpop.f32.mrb[0].mxu0
        %v812 = vpop.f32.mrb[0].mxu0
        %813 = vdwg.mxu0
        %v814 = vsel %vm424, %v809, -inf
        %815 = vmax.xlane.f32.xlu0 %v814
        %v816 = vpop.xlane.xlu0 %815
        %v817 = vsub.f32 %v809, %v816
        %v818 = vmul.f32 %v817, 1.442695
        %v819 = vpow.pop %v818
        %v820 = vsel %vm424, %v819, 0.0
        %821 = vadd.xlane.f32.xlu0 %v820
        %v822 = vpop.xlane.xlu0 %821
        %v823 = vrcp.pop %v822
        %v824 = vmul.f32 %v819, %v823
        %v825 = vpack.c.bf16 %v824, %v824
        %826 = vrot.lane.b32.xlu0 %v763, 52
        %v827 = vpop.permute.xlu0 %826
        %v829 = vsel %vm377, %v825, 0
        %v832 = vsel %vm442, %v827, 0
        %834 = vmatprep.subr.bf16.mxu0 0
        %835 = vmatpush1.bf16.msra.mxu0 %v832
        %836 = vmatprep.subr.bf16.mxu0 0
        %837 = vmatpush1.bf16.msra.mxu0 0
        %838 = vmatprep.subr.bf16.mxu0 0
        %839 = vmatpush1.bf16.msra.mxu0 0
        %840 = vmatprep.subr.bf16.mxu0 0
        %841 = vmatpush1.bf16.msra.mxu0 0
        %842 = vmatprep.subr.bf16.mxu0 0
        %843 = vmatpush1.bf16.msra.mxu0 0
        %844 = vmatprep.subr.bf16.mxu0 0
        %845 = vmatpush1.bf16.msra.mxu0 0
        %846 = vmatprep.subr.bf16.mxu0 0
        %847 = vmatpush1.bf16.msra.mxu0 0
        %848 = vmatprep.subr.bf16.mxu0 0
        %849 = vmatpush1.bf16.msra.mxu0 0
        %850 = vmatprep.subr.bf16.mxu0 0
        %851 = vmatpush1.bf16.msra.mxu0 0
        %852 = vmatprep.subr.bf16.mxu0 0
        %853 = vmatpush1.bf16.msra.mxu0 0
        %854 = vmatprep.subr.bf16.mxu0 0
        %855 = vmatpush1.bf16.msra.mxu0 0
        %856 = vmatprep.subr.bf16.mxu0 0
        %857 = vmatpush1.bf16.msra.mxu0 0
        %858 = vmatprep.subr.bf16.mxu0 0
        %859 = vmatpush1.bf16.msra.mxu0 0
        %860 = vmatprep.subr.bf16.mxu0 0
        %861 = vmatpush1.bf16.msra.mxu0 0
        %862 = vmatprep.subr.bf16.mxu0 0
        %863 = vmatpush1.bf16.msra.mxu0 0
        %864 = vmatprep.subr.bf16.mxu0 0
        %865 = vmatpush1.bf16.msra.mxu0 0
        %866 = vmatprep.mubr.bf16.mxu0 0
        %867 = vmatmul.mubr.bf16.gmra.mrb[0].mxu0 %v829
        %v868 = vpop.f32.mrb[0].mxu0
        %v869 = vadd.f32 0.0, %v868
        %v870 = vpop.f32.mrb[0].mxu0
        %v871 = vpop.f32.mrb[0].mxu0
        %v872 = vpop.f32.mrb[0].mxu0
        %873 = vdwg.mxu0
        %v874 = vpack.c.bf16 %v869, %v869
        %v877 = vunpack.c.l.s4 1983009808
        %v878 = vunpack.c.0.s8 %v877
        %v879 = vlaneseq
        %v880 = vshrl.u32 %v879, 7
        %v881 = vsub.s32 %v878, %v880
        %v882 = vrot.slane %v874, %v881
        %883 = vrot.lane.b32.xlu0 %v882, 12
        %v884 = vpop.permute.xlu0 %883
        %vm886 = vcmask 124000
        %887 = vst.msk [vmem:[#allocation3] sm:$0x3] %vm886, %v884
        %v888 = vld [vmem:[#allocation2] sm:$0x3]
        %v891 = vunpack.c.l.s4 1983009808
        %v892 = vunpack.c.0.s8 %v891
        %v893 = vlaneseq
        %v894 = vshrl.u32 %v893, 7
        %v895 = vsub.s32 %v892, %v894
        %v896 = vrot.slane %v888, %v895
        %897 = vrot.lane.b32.xlu0 %v896, 112
        %v898 = vpop.permute.xlu0 %897
        %899 = vrot.lane.b32.xlu0 %v896, 80
        %v900 = vpop.permute.xlu0 %899
        %v902 = vsel %vm377, %v898, 0
        %v905 = vsel %vm377, %v900, 0
        %907 = vmatprep.subr.bf16.mxu0 0
        %908 = vmatpush1.bf16.xpose.msra.mxu0 %v905
        %909 = vmatprep.subr.bf16.mxu0 0
        %910 = vmatpush1.bf16.xpose.msra.mxu0 0
        %911 = vmatprep.subr.bf16.mxu0 0
        %912 = vmatpush1.bf16.xpose.msra.mxu0 0
        %913 = vmatprep.subr.bf16.mxu0 0
        %914 = vmatpush1.bf16.xpose.msra.mxu0 0
        %915 = vmatprep.subr.bf16.mxu0 0
        %916 = vmatpush1.bf16.xpose.msra.mxu0 0
        %917 = vmatprep.subr.bf16.mxu0 0
        %918 = vmatpush1.bf16.xpose.msra.mxu0 0
        %919 = vmatprep.subr.bf16.mxu0 0
        %920 = vmatpush1.bf16.xpose.msra.mxu0 0
        %921 = vmatprep.subr.bf16.mxu0 0
        %922 = vmatpush1.bf16.xpose.msra.mxu0 0
        %923 = vmatprep.subr.bf16.mxu0 0
        %924 = vmatpush1.bf16.xpose.msra.mxu0 0
        %925 = vmatprep.subr.bf16.mxu0 0
        %926 = vmatpush1.bf16.xpose.msra.mxu0 0
        %927 = vmatprep.subr.bf16.mxu0 0
        %928 = vmatpush1.bf16.xpose.msra.mxu0 0
        %929 = vmatprep.subr.bf16.mxu0 0
        %930 = vmatpush1.bf16.xpose.msra.mxu0 0
        %931 = vmatprep.subr.bf16.mxu0 0
        %932 = vmatpush1.bf16.xpose.msra.mxu0 0
        %933 = vmatprep.subr.bf16.mxu0 0
        %934 = vmatpush1.bf16.xpose.msra.mxu0 0
        %935 = vmatprep.subr.bf16.mxu0 0
        %936 = vmatpush1.bf16.xpose.msra.mxu0 0
        %937 = vmatprep.subr.bf16.mxu0 0
        %938 = vmatpush1.bf16.xpose.msra.mxu0 0
        %939 = vmatprep.mubr.bf16.mxu0 0
        %940 = vmatmul.mubr.bf16.gmra.mrb[0].mxu0 %v902
        %v941 = vpop.f32.mrb[0].mxu0
        %v942 = vadd.f32 0.0, %v941
        %v943 = vpop.f32.mrb[0].mxu0
        %v944 = vpop.f32.mrb[0].mxu0
        %v945 = vpop.f32.mrb[0].mxu0
        %946 = vdwg.mxu0
        %v947 = vsel %vm424, %v942, -inf
        %948 = vmax.xlane.f32.xlu0 %v947
        %v949 = vpop.xlane.xlu0 %948
        %v950 = vsub.f32 %v942, %v949
        %v951 = vmul.f32 %v950, 1.442695
        %v952 = vpow.pop %v951
        %v953 = vsel %vm424, %v952, 0.0
        %954 = vadd.xlane.f32.xlu0 %v953
        %v955 = vpop.xlane.xlu0 %954
        %v956 = vrcp.pop %v955
        %v957 = vmul.f32 %v952, %v956
        %v958 = vpack.c.bf16 %v957, %v957
        %959 = vrot.lane.b32.xlu0 %v896, 48
        %v960 = vpop.permute.xlu0 %959
        %v962 = vsel %vm377, %v958, 0
        %v965 = vsel %vm442, %v960, 0
        %967 = vmatprep.subr.bf16.mxu0 0
        %968 = vmatpush1.bf16.msra.mxu0 %v965
        %969 = vmatprep.subr.bf16.mxu0 0
        %970 = vmatpush1.bf16.msra.mxu0 0
        %971 = vmatprep.subr.bf16.mxu0 0
        %972 = vmatpush1.bf16.msra.mxu0 0
        %973 = vmatprep.subr.bf16.mxu0 0
        %974 = vmatpush1.bf16.msra.mxu0 0
        %975 = vmatprep.subr.bf16.mxu0 0
        %976 = vmatpush1.bf16.msra.mxu0 0
        %977 = vmatprep.subr.bf16.mxu0 0
        %978 = vmatpush1.bf16.msra.mxu0 0
        %979 = vmatprep.subr.bf16.mxu0 0
        %980 = vmatpush1.bf16.msra.mxu0 0
        %981 = vmatprep.subr.bf16.mxu0 0
        %982 = vmatpush1.bf16.msra.mxu0 0
        %983 = vmatprep.subr.bf16.mxu0 0
        %984 = vmatpush1.bf16.msra.mxu0 0
        %985 = vmatprep.subr.bf16.mxu0 0
        %986 = vmatpush1.bf16.msra.mxu0 0
        %987 = vmatprep.subr.bf16.mxu0 0
        %988 = vmatpush1.bf16.msra.mxu0 0
        %989 = vmatprep.subr.bf16.mxu0 0
        %990 = vmatpush1.bf16.msra.mxu0 0
        %991 = vmatprep.subr.bf16.mxu0 0
        %992 = vmatpush1.bf16.msra.mxu0 0
        %993 = vmatprep.subr.bf16.mxu0 0
        %994 = vmatpush1.bf16.msra.mxu0 0
        %995 = vmatprep.subr.bf16.mxu0 0
        %996 = vmatpush1.bf16.msra.mxu0 0
        %997 = vmatprep.subr.bf16.mxu0 0
        %998 = vmatpush1.bf16.msra.mxu0 0
        %999 = vmatprep.mubr.bf16.mxu0 0
        %1000 = vmatmul.mubr.bf16.gmra.mrb[0].mxu0 %v962
        %v1001 = vpop.f32.mrb[0].mxu0
        %v1002 = vadd.f32 0.0, %v1001
        %v1003 = vpop.f32.mrb[0].mxu0
        %v1004 = vpop.f32.mrb[0].mxu0
        %v1005 = vpop.f32.mrb[0].mxu0
        %1006 = vdwg.mxu0
        %v1007 = vpack.c.bf16 %v1002, %v1002
        %v1010 = vunpack.c.l.s4 1983009808
        %v1011 = vunpack.c.0.s8 %v1010
        %v1012 = vlaneseq
        %v1013 = vshrl.u32 %v1012, 7
        %v1014 = vsub.s32 %v1011, %v1013
        %v1015 = vrot.slane %v1007, %v1014
        %1016 = vrot.lane.b32.xlu0 %v1015, 16
        %v1017 = vpop.permute.xlu0 %1016
        %vm1019 = vcmask 156800
        %1020 = vst.msk [vmem:[#allocation3] sm:$0x3] %vm1019, %v1017
        %v1021 = vld [vmem:[#allocation2] sm:$0x3]
        %v1024 = vunpack.c.l.s4 1983009808
        %v1025 = vunpack.c.0.s8 %v1024
        %v1026 = vlaneseq
        %v1027 = vshrl.u32 %v1026, 7
        %v1028 = vsub.s32 %v1025, %v1027
        %v1029 = vrot.slane %v1021, %v1028
        %1030 = vrot.lane.b32.xlu0 %v1029, 108
        %v1031 = vpop.permute.xlu0 %1030
        %1032 = vrot.lane.b32.xlu0 %v1029, 76
        %v1033 = vpop.permute.xlu0 %1032
        %v1035 = vsel %vm377, %v1031, 0
        %v1038 = vsel %vm377, %v1033, 0
        %1040 = vmatprep.subr.bf16.mxu0 0
        %1041 = vmatpush1.bf16.xpose.msra.mxu0 %v1038
        %1042 = vmatprep.subr.bf16.mxu0 0
        %1043 = vmatpush1.bf16.xpose.msra.mxu0 0
        %1044 = vmatprep.subr.bf16.mxu0 0
        %1045 = vmatpush1.bf16.xpose.msra.mxu0 0
        %1046 = vmatprep.subr.bf16.mxu0 0
        %1047 = vmatpush1.bf16.xpose.msra.mxu0 0
        %1048 = vmatprep.subr.bf16.mxu0 0
        %1049 = vmatpush1.bf16.xpose.msra.mxu0 0
        %1050 = vmatprep.subr.bf16.mxu0 0
        %1051 = vmatpush1.bf16.xpose.msra.mxu0 0
        %1052 = vmatprep.subr.bf16.mxu0 0
        %1053 = vmatpush1.bf16.xpose.msra.mxu0 0
        %1054 = vmatprep.subr.bf16.mxu0 0
        %1055 = vmatpush1.bf16.xpose.msra.mxu0 0
        %1056 = vmatprep.subr.bf16.mxu0 0
        %1057 = vmatpush1.bf16.xpose.msra.mxu0 0
        %1058 = vmatprep.subr.bf16.mxu0 0
        %1059 = vmatpush1.bf16.xpose.msra.mxu0 0
        %1060 = vmatprep.subr.bf16.mxu0 0
        %1061 = vmatpush1.bf16.xpose.msra.mxu0 0
        %1062 = vmatprep.subr.bf16.mxu0 0
        %1063 = vmatpush1.bf16.xpose.msra.mxu0 0
        %1064 = vmatprep.subr.bf16.mxu0 0
        %1065 = vmatpush1.bf16.xpose.msra.mxu0 0
        %1066 = vmatprep.subr.bf16.mxu0 0
        %1067 = vmatpush1.bf16.xpose.msra.mxu0 0
        %1068 = vmatprep.subr.bf16.mxu0 0
        %1069 = vmatpush1.bf16.xpose.msra.mxu0 0
        %1070 = vmatprep.subr.bf16.mxu0 0
        %1071 = vmatpush1.bf16.xpose.msra.mxu0 0
        %1072 = vmatprep.mubr.bf16.mxu0 0
        %1073 = vmatmul.mubr.bf16.gmra.mrb[0].mxu0 %v1035
        %v1074 = vpop.f32.mrb[0].mxu0
        %v1075 = vadd.f32 0.0, %v1074
        %v1076 = vpop.f32.mrb[0].mxu0
        %v1077 = vpop.f32.mrb[0].mxu0
        %v1078 = vpop.f32.mrb[0].mxu0
        %1079 = vdwg.mxu0
        %v1080 = vsel %vm424, %v1075, -inf
        %1081 = vmax.xlane.f32.xlu0 %v1080
        %v1082 = vpop.xlane.xlu0 %1081
        %v1083 = vsub.f32 %v1075, %v1082
        %v1084 = vmul.f32 %v1083, 1.442695
        %v1085 = vpow.pop %v1084
        %v1086 = vsel %vm424, %v1085, 0.0
        %1087 = vadd.xlane.f32.xlu0 %v1086
        %v1088 = vpop.xlane.xlu0 %1087
        %v1089 = vrcp.pop %v1088
        %v1090 = vmul.f32 %v1085, %v1089
        %v1091 = vpack.c.bf16 %v1090, %v1090
        %1092 = vrot.lane.b32.xlu0 %v1029, 44
        %v1093 = vpop.permute.xlu0 %1092
        %v1095 = vsel %vm377, %v1091, 0
        %v1098 = vsel %vm442, %v1093, 0
        %1100 = vmatprep.subr.bf16.mxu0 0
        %1101 = vmatpush1.bf16.msra.mxu0 %v1098
        %1102 = vmatprep.subr.bf16.mxu0 0
        %1103 = vmatpush1.bf16.msra.mxu0 0
        %1104 = vmatprep.subr.bf16.mxu0 0
        %1105 = vmatpush1.bf16.msra.mxu0 0
        %1106 = vmatprep.subr.bf16.mxu0 0
        %1107 = vmatpush1.bf16.msra.mxu0 0
        %1108 = vmatprep.subr.bf16.mxu0 0
        %1109 = vmatpush1.bf16.msra.mxu0 0
        %1110 = vmatprep.subr.bf16.mxu0 0
        %1111 = vmatpush1.bf16.msra.mxu0 0
        %1112 = vmatprep.subr.bf16.mxu0 0
        %1113 = vmatpush1.bf16.msra.mxu0 0
        %1114 = vmatprep.subr.bf16.mxu0 0
        %1115 = vmatpush1.bf16.msra.mxu0 0
        %1116 = vmatprep.subr.bf16.mxu0 0
        %1117 = vmatpush1.bf16.msra.mxu0 0
        %1118 = vmatprep.subr.bf16.mxu0 0
        %1119 = vmatpush1.bf16.msra.mxu0 0
        %1120 = vmatprep.subr.bf16.mxu0 0
        %1121 = vmatpush1.bf16.msra.mxu0 0
        %1122 = vmatprep.subr.bf16.mxu0 0
        %1123 = vmatpush1.bf16.msra.mxu0 0
        %1124 = vmatprep.subr.bf16.mxu0 0
        %1125 = vmatpush1.bf16.msra.mxu0 0
        %1126 = vmatprep.subr.bf16.mxu0 0
        %1127 = vmatpush1.bf16.msra.mxu0 0
        %1128 = vmatprep.subr.bf16.mxu0 0
        %1129 = vmatpush1.bf16.msra.mxu0 0
        %1130 = vmatprep.subr.bf16.mxu0 0
        %1131 = vmatpush1.bf16.msra.mxu0 0
        %1132 = vmatprep.mubr.bf16.mxu0 0
        %1133 = vmatmul.mubr.bf16.gmra.mrb[0].mxu0 %v1095
        %v1134 = vpop.f32.mrb[0].mxu0
        %v1135 = vadd.f32 0.0, %v1134
        %v1136 = vpop.f32.mrb[0].mxu0
        %v1137 = vpop.f32.mrb[0].mxu0
        %v1138 = vpop.f32.mrb[0].mxu0
        %1139 = vdwg.mxu0
        %v1140 = vpack.c.bf16 %v1135, %v1135
        %v1143 = vunpack.c.l.s4 1983009808
        %v1144 = vunpack.c.0.s8 %v1143
        %v1145 = vlaneseq
        %v1146 = vshrl.u32 %v1145, 7
        %v1147 = vsub.s32 %v1144, %v1146
        %v1148 = vrot.slane %v1140, %v1147
        %1149 = vrot.lane.b32.xlu0 %v1148, 20
        %v1150 = vpop.permute.xlu0 %1149
        %vm1152 = vcmask 189600
        %1153 = vst.msk [vmem:[#allocation3] sm:$0x3] %vm1152, %v1150
        %v1154 = vld [vmem:[#allocation2] sm:$0x3]
        %v1157 = vunpack.c.l.s4 1983009808
        %v1158 = vunpack.c.0.s8 %v1157
        %v1159 = vlaneseq
        %v1160 = vshrl.u32 %v1159, 7
        %v1161 = vsub.s32 %v1158, %v1160
        %v1162 = vrot.slane %v1154, %v1161
        %1163 = vrot.lane.b32.xlu0 %v1162, 104
        %v1164 = vpop.permute.xlu0 %1163
        %1165 = vrot.lane.b32.xlu0 %v1162, 72
        %v1166 = vpop.permute.xlu0 %1165
        %v1168 = vsel %vm377, %v1164, 0
        %v1171 = vsel %vm377, %v1166, 0
        %1173 = vmatprep.subr.bf16.mxu0 0
        %1174 = vmatpush1.bf16.xpose.msra.mxu0 %v1171
        %1175 = vmatprep.subr.bf16.mxu0 0
        %1176 = vmatpush1.bf16.xpose.msra.mxu0 0
        %1177 = vmatprep.subr.bf16.mxu0 0
        %1178 = vmatpush1.bf16.xpose.msra.mxu0 0
        %1179 = vmatprep.subr.bf16.mxu0 0
        %1180 = vmatpush1.bf16.xpose.msra.mxu0 0
        %1181 = vmatprep.subr.bf16.mxu0 0
        %1182 = vmatpush1.bf16.xpose.msra.mxu0 0
        %1183 = vmatprep.subr.bf16.mxu0 0
        %1184 = vmatpush1.bf16.xpose.msra.mxu0 0
        %1185 = vmatprep.subr.bf16.mxu0 0
        %1186 = vmatpush1.bf16.xpose.msra.mxu0 0
        %1187 = vmatprep.subr.bf16.mxu0 0
        %1188 = vmatpush1.bf16.xpose.msra.mxu0 0
        %1189 = vmatprep.subr.bf16.mxu0 0
        %1190 = vmatpush1.bf16.xpose.msra.mxu0 0
        %1191 = vmatprep.subr.bf16.mxu0 0
        %1192 = vmatpush1.bf16.xpose.msra.mxu0 0
        %1193 = vmatprep.subr.bf16.mxu0 0
        %1194 = vmatpush1.bf16.xpose.msra.mxu0 0
        %1195 = vmatprep.subr.bf16.mxu0 0
        %1196 = vmatpush1.bf16.xpose.msra.mxu0 0
        %1197 = vmatprep.subr.bf16.mxu0 0
        %1198 = vmatpush1.bf16.xpose.msra.mxu0 0
        %1199 = vmatprep.subr.bf16.mxu0 0
        %1200 = vmatpush1.bf16.xpose.msra.mxu0 0
        %1201 = vmatprep.subr.bf16.mxu0 0
        %1202 = vmatpush1.bf16.xpose.msra.mxu0 0
        %1203 = vmatprep.subr.bf16.mxu0 0
        %1204 = vmatpush1.bf16.xpose.msra.mxu0 0
        %1205 = vmatprep.mubr.bf16.mxu0 0
        %1206 = vmatmul.mubr.bf16.gmra.mrb[0].mxu0 %v1168
        %v1207 = vpop.f32.mrb[0].mxu0
        %v1208 = vadd.f32 0.0, %v1207
        %v1209 = vpop.f32.mrb[0].mxu0
        %v1210 = vpop.f32.mrb[0].mxu0
        %v1211 = vpop.f32.mrb[0].mxu0
        %1212 = vdwg.mxu0
        %v1213 = vsel %vm424, %v1208, -inf
        %1214 = vmax.xlane.f32.xlu0 %v1213
        %v1215 = vpop.xlane.xlu0 %1214
        %v1216 = vsub.f32 %v1208, %v1215
        %v1217 = vmul.f32 %v1216, 1.442695
        %v1218 = vpow.pop %v1217
        %v1219 = vsel %vm424, %v1218, 0.0
        %1220 = vadd.xlane.f32.xlu0 %v1219
        %v1221 = vpop.xlane.xlu0 %1220
        %v1222 = vrcp.pop %v1221
        %v1223 = vmul.f32 %v1218, %v1222
        %v1224 = vpack.c.bf16 %v1223, %v1223
        %1225 = vrot.lane.b32.xlu0 %v1162, 40
        %v1226 = vpop.permute.xlu0 %1225
        %v1228 = vsel %vm377, %v1224, 0
        %v1231 = vsel %vm442, %v1226, 0
        %1233 = vmatprep.subr.bf16.mxu0 0
        %1234 = vmatpush1.bf16.msra.mxu0 %v1231
        %1235 = vmatprep.subr.bf16.mxu0 0
        %1236 = vmatpush1.bf16.msra.mxu0 0
        %1237 = vmatprep.subr.bf16.mxu0 0
        %1238 = vmatpush1.bf16.msra.mxu0 0
        %1239 = vmatprep.subr.bf16.mxu0 0
        %1240 = vmatpush1.bf16.msra.mxu0 0
        %1241 = vmatprep.subr.bf16.mxu0 0
        %1242 = vmatpush1.bf16.msra.mxu0 0
        %1243 = vmatprep.subr.bf16.mxu0 0
        %1244 = vmatpush1.bf16.msra.mxu0 0
        %1245 = vmatprep.subr.bf16.mxu0 0
        %1246 = vmatpush1.bf16.msra.mxu0 0
        %1247 = vmatprep.subr.bf16.mxu0 0
        %1248 = vmatpush1.bf16.msra.mxu0 0
        %1249 = vmatprep.subr.bf16.mxu0 0
        %1250 = vmatpush1.bf16.msra.mxu0 0
        %1251 = vmatprep.subr.bf16.mxu0 0
        %1252 = vmatpush1.bf16.msra.mxu0 0
        %1253 = vmatprep.subr.bf16.mxu0 0
        %1254 = vmatpush1.bf16.msra.mxu0 0
        %1255 = vmatprep.subr.bf16.mxu0 0
        %1256 = vmatpush1.bf16.msra.mxu0 0
        %1257 = vmatprep.subr.bf16.mxu0 0
        %1258 = vmatpush1.bf16.msra.mxu0 0
        %1259 = vmatprep.subr.bf16.mxu0 0
        %1260 = vmatpush1.bf16.msra.mxu0 0
        %1261 = vmatprep.subr.bf16.mxu0 0
        %1262 = vmatpush1.bf16.msra.mxu0 0
        %1263 = vmatprep.subr.bf16.mxu0 0
        %1264 = vmatpush1.bf16.msra.mxu0 0
        %1265 = vmatprep.mubr.bf16.mxu0 0
        %1266 = vmatmul.mubr.bf16.gmra.mrb[0].mxu0 %v1228
        %v1267 = vpop.f32.mrb[0].mxu0
        %v1268 = vadd.f32 0.0, %v1267
        %v1269 = vpop.f32.mrb[0].mxu0
        %v1270 = vpop.f32.mrb[0].mxu0
        %v1271 = vpop.f32.mrb[0].mxu0
        %1272 = vdwg.mxu0
        %v1273 = vpack.c.bf16 %v1268, %v1268
        %v1276 = vunpack.c.l.s4 1983009808
        %v1277 = vunpack.c.0.s8 %v1276
        %v1278 = vlaneseq
        %v1279 = vshrl.u32 %v1278, 7
        %v1280 = vsub.s32 %v1277, %v1279
        %v1281 = vrot.slane %v1273, %v1280
        %1282 = vrot.lane.b32.xlu0 %v1281, 24
        %v1283 = vpop.permute.xlu0 %1282
        %vm1285 = vcmask 222400
        %1286 = vst.msk [vmem:[#allocation3] sm:$0x3] %vm1285, %v1283
        %v1287 = vld [vmem:[#allocation2] sm:$0x3]
        %v1290 = vunpack.c.l.s4 1983009808
        %v1291 = vunpack.c.0.s8 %v1290
        %v1292 = vlaneseq
        %v1293 = vshrl.u32 %v1292, 7
        %v1294 = vsub.s32 %v1291, %v1293
        %v1295 = vrot.slane %v1287, %v1294
        %1296 = vrot.lane.b32.xlu0 %v1295, 100
        %v1297 = vpop.permute.xlu0 %1296
        %1298 = vrot.lane.b32.xlu0 %v1295, 68
        %v1299 = vpop.permute.xlu0 %1298
        %v1301 = vsel %vm377, %v1297, 0
        %v1304 = vsel %vm377, %v1299, 0
        %1306 = vmatprep.subr.bf16.mxu0 0
        %1307 = vmatpush1.bf16.xpose.msra.mxu0 %v1304
        %1308 = vmatprep.subr.bf16.mxu0 0
        %1309 = vmatpush1.bf16.xpose.msra.mxu0 0
        %1310 = vmatprep.subr.bf16.mxu0 0
        %1311 = vmatpush1.bf16.xpose.msra.mxu0 0
        %1312 = vmatprep.subr.bf16.mxu0 0
        %1313 = vmatpush1.bf16.xpose.msra.mxu0 0
        %1314 = vmatprep.subr.bf16.mxu0 0
        %1315 = vmatpush1.bf16.xpose.msra.mxu0 0
        %1316 = vmatprep.subr.bf16.mxu0 0
        %1317 = vmatpush1.bf16.xpose.msra.mxu0 0
        %1318 = vmatprep.subr.bf16.mxu0 0
        %1319 = vmatpush1.bf16.xpose.msra.mxu0 0
        %1320 = vmatprep.subr.bf16.mxu0 0
        %1321 = vmatpush1.bf16.xpose.msra.mxu0 0
        %1322 = vmatprep.subr.bf16.mxu0 0
        %1323 = vmatpush1.bf16.xpose.msra.mxu0 0
        %1324 = vmatprep.subr.bf16.mxu0 0
        %1325 = vmatpush1.bf16.xpose.msra.mxu0 0
        %1326 = vmatprep.subr.bf16.mxu0 0
        %1327 = vmatpush1.bf16.xpose.msra.mxu0 0
        %1328 = vmatprep.subr.bf16.mxu0 0
        %1329 = vmatpush1.bf16.xpose.msra.mxu0 0
        %1330 = vmatprep.subr.bf16.mxu0 0
        %1331 = vmatpush1.bf16.xpose.msra.mxu0 0
        %1332 = vmatprep.subr.bf16.mxu0 0
        %1333 = vmatpush1.bf16.xpose.msra.mxu0 0
        %1334 = vmatprep.subr.bf16.mxu0 0
        %1335 = vmatpush1.bf16.xpose.msra.mxu0 0
        %1336 = vmatprep.subr.bf16.mxu0 0
        %1337 = vmatpush1.bf16.xpose.msra.mxu0 0
        %1338 = vmatprep.mubr.bf16.mxu0 0
        %1339 = vmatmul.mubr.bf16.gmra.mrb[0].mxu0 %v1301
        %v1340 = vpop.f32.mrb[0].mxu0
        %v1341 = vadd.f32 0.0, %v1340
        %v1342 = vpop.f32.mrb[0].mxu0
        %v1343 = vpop.f32.mrb[0].mxu0
        %v1344 = vpop.f32.mrb[0].mxu0
        %1345 = vdwg.mxu0
        %v1346 = vsel %vm424, %v1341, -inf
        %1347 = vmax.xlane.f32.xlu0 %v1346
        %v1348 = vpop.xlane.xlu0 %1347
        %v1349 = vsub.f32 %v1341, %v1348
        %v1350 = vmul.f32 %v1349, 1.442695
        %v1351 = vpow.pop %v1350
        %v1352 = vsel %vm424, %v1351, 0.0
        %1353 = vadd.xlane.f32.xlu0 %v1352
        %v1354 = vpop.xlane.xlu0 %1353
        %v1355 = vrcp.pop %v1354
        %v1356 = vmul.f32 %v1351, %v1355
        %v1357 = vpack.c.bf16 %v1356, %v1356
        %1358 = vrot.lane.b32.xlu0 %v1295, 36
        %v1359 = vpop.permute.xlu0 %1358
        %v1361 = vsel %vm377, %v1357, 0
        %v1364 = vsel %vm442, %v1359, 0
        %1366 = vmatprep.subr.bf16.mxu0 0
        %1367 = vmatpush1.bf16.msra.mxu0 %v1364
        %1368 = vmatprep.subr.bf16.mxu0 0
        %1369 = vmatpush1.bf16.msra.mxu0 0
        %1370 = vmatprep.subr.bf16.mxu0 0
        %1371 = vmatpush1.bf16.msra.mxu0 0
        %1372 = vmatprep.subr.bf16.mxu0 0
        %1373 = vmatpush1.bf16.msra.mxu0 0
        %1374 = vmatprep.subr.bf16.mxu0 0
        %1375 = vmatpush1.bf16.msra.mxu0 0
        %1376 = vmatprep.subr.bf16.mxu0 0
        %1377 = vmatpush1.bf16.msra.mxu0 0
        %1378 = vmatprep.subr.bf16.mxu0 0
        %1379 = vmatpush1.bf16.msra.mxu0 0
        %1380 = vmatprep.subr.bf16.mxu0 0
        %1381 = vmatpush1.bf16.msra.mxu0 0
        %1382 = vmatprep.subr.bf16.mxu0 0
        %1383 = vmatpush1.bf16.msra.mxu0 0
        %1384 = vmatprep.subr.bf16.mxu0 0
        %1385 = vmatpush1.bf16.msra.mxu0 0
        %1386 = vmatprep.subr.bf16.mxu0 0
        %1387 = vmatpush1.bf16.msra.mxu0 0
        %1388 = vmatprep.subr.bf16.mxu0 0
        %1389 = vmatpush1.bf16.msra.mxu0 0
        %1390 = vmatprep.subr.bf16.mxu0 0
        %1391 = vmatpush1.bf16.msra.mxu0 0
        %1392 = vmatprep.subr.bf16.mxu0 0
        %1393 = vmatpush1.bf16.msra.mxu0 0
        %1394 = vmatprep.subr.bf16.mxu0 0
        %1395 = vmatpush1.bf16.msra.mxu0 0
        %1396 = vmatprep.subr.bf16.mxu0 0
        %1397 = vmatpush1.bf16.msra.mxu0 0
        %1398 = vmatprep.mubr.bf16.mxu0 0
        %1399 = vmatmul.mubr.bf16.gmra.mrb[0].mxu0 %v1361
        %v1400 = vpop.f32.mrb[0].mxu0
        %v1401 = vadd.f32 0.0, %v1400
        %v1402 = vpop.f32.mrb[0].mxu0
        %v1403 = vpop.f32.mrb[0].mxu0
        %v1404 = vpop.f32.mrb[0].mxu0
        %1405 = vdwg.mxu0
        %v1406 = vpack.c.bf16 %v1401, %v1401
        %v1409 = vunpack.c.l.s4 1983009808
        %v1410 = vunpack.c.0.s8 %v1409
        %v1411 = vlaneseq
        %v1412 = vshrl.u32 %v1411, 7
        %v1413 = vsub.s32 %v1410, %v1412
        %v1414 = vrot.slane %v1406, %v1413
        %1415 = vrot.lane.b32.xlu0 %v1414, 28
        %v1416 = vpop.permute.xlu0 %1415
        %vm1418 = vcmask 255200
        %1419 = vst.msk [vmem:[#allocation3] sm:$0x3] %vm1418, %v1416
        %v1420 = vld [vmem:[#allocation3] sm:$0x3]
        %v1421 = vld [vmem:[#allocation10] sm:$0xf]
        %v1422 = vld [vmem:[#allocation10 + $0x4] sm:$0xf]
        %v1423 = vld [vmem:[#allocation10 + $0x8] sm:$0xf]
        %v1424 = vld [vmem:[#allocation10 + $0xc] sm:$0xf]
        %v1425 = vld [vmem:[#allocation12] sm:$0x1]
        %v1427 = vlaneseq
        %v1428 = vshrl.u32 %v1427, 7
        %v1429 = vsub.s32 0, %v1428
        %v1430 = vrot.slane %v1425, %v1429
        %v1436 = vunpack.c.l.b16 %v1421
        %v1437 = vunpack.c.l.b16 %v1422
        %v1438 = vunpack.c.l.b16 %v1423
        %v1439 = vunpack.c.l.b16 %v1424
        %v1440 = vpack.c.b16 %v1437, %v1436
        %v1441 = vpack.c.b16 %v1439, %v1438
        %v1445 = vsel %vm319, %v1420, 0
        %1447 = vmatprep.subr.bf16.mxu0 0
        %1448 = vmatpush1.bf16.msra.mxu0 %v1440
        %1449 = vmatprep.subr.bf16.mxu0 0
        %1450 = vmatpush1.bf16.msra.mxu0 %v1441
        %1451 = vmatprep.subr.bf16.mxu0 0
        %1452 = vmatpush1.bf16.msra.mxu0 0
        %1453 = vmatprep.subr.bf16.mxu0 0
        %1454 = vmatpush1.bf16.msra.mxu0 0
        %1455 = vmatprep.subr.bf16.mxu0 0
        %1456 = vmatpush1.bf16.msra.mxu0 0
        %1457 = vmatprep.subr.bf16.mxu0 0
        %1458 = vmatpush1.bf16.msra.mxu0 0
        %1459 = vmatprep.subr.bf16.mxu0 0
        %1460 = vmatpush1.bf16.msra.mxu0 0
        %1461 = vmatprep.subr.bf16.mxu0 0
        %1462 = vmatpush1.bf16.msra.mxu0 0
        %1463 = vmatprep.subr.bf16.mxu0 0
        %1464 = vmatpush1.bf16.msra.mxu0 0
        %1465 = vmatprep.subr.bf16.mxu0 0
        %1466 = vmatpush1.bf16.msra.mxu0 0
        %1467 = vmatprep.subr.bf16.mxu0 0
        %1468 = vmatpush1.bf16.msra.mxu0 0
        %1469 = vmatprep.subr.bf16.mxu0 0
        %1470 = vmatpush1.bf16.msra.mxu0 0
        %1471 = vmatprep.subr.bf16.mxu0 0
        %1472 = vmatpush1.bf16.msra.mxu0 0
        %1473 = vmatprep.subr.bf16.mxu0 0
        %1474 = vmatpush1.bf16.msra.mxu0 0
        %1475 = vmatprep.subr.bf16.mxu0 0
        %1476 = vmatpush1.bf16.msra.mxu0 0
        %1477 = vmatprep.subr.bf16.mxu0 0
        %1478 = vmatpush1.bf16.msra.mxu0 0
        %1479 = vmatprep.mubr.bf16.mxu0 0
        %1480 = vmatmul.mubr.bf16.gmra.mrb[0].mxu0 %v1445
        %v1481 = vpop.f32.mrb[0].mxu0
        %v1482 = vadd.f32 %v1430, %v1481
        %v1483 = vpop.f32.mrb[0].mxu0
        %v1484 = vpop.f32.mrb[0].mxu0
        %v1485 = vpop.f32.mrb[0].mxu0
        %1486 = vdwg.mxu0
        %vm1487 = vcmask 257024
        %1488 = vst.msk [vmem:[%s293] sm:$0xf] %vm1487, %v1482
        %s1489 = sand.u32 %s142, 1
        %s1490 = scalar_lea.sflag [#allocation6], %s1489
        %s1491 = sand.u32 %s142, 1
        %s1492 = smul.addr %s1491, 4
        %s1493 = scalar_lea.vmem [#allocation13], %s1492
        // Predicated region
        $region61: #{tpu_custom_call.1} parent=39 // pred_check
          %p1494 = pneg %p152
        $region62: #{tpu_custom_call.1} parent=39 // pred_check_branch
          %1496 = sbr.rel (%p1494) target = $region64
        $region63: #{tpu_custom_call.1} parent=39 // pred_region
          %s1498 = ssub.s32 64, 64
          %1499 = vsyncadd %s1490, %s1498
          %s1500 = smul.addr %s24, 64
          %s1501 = scalar_lea.hbm %s5, %s1500
          %s1503 = sshll.u32 %s1493, 4
          %s1504 = int_to_ptr.vmem [resolvable:$true] %s1503
          %1506 = dma.vmem_to_hbm [thread:$0]  %s1504, 64, %s1501, %s1490
        $region64: #{tpu_custom_call.1} parent=39 // pred_fallthru
          _
      $region40: #{tpu_custom_call.1} parent=5 // pred_fallthru
        _
      %p1507 = scmp.le.s32.totalorder 2, %s19
      // Predicated region
      $region65: #{tpu_custom_call.1} parent=5 // pred_check
        %p1508 = pneg %p1507
      $region66: #{tpu_custom_call.1} parent=5 // pred_check_branch
        %1510 = sbr.rel (%p1508) target = $region68
      $region67: #{tpu_custom_call.1} parent=5 // pred_region
        %s1511 = ssub.s32 %s19, 2
        // Predicated region
        $region69: #{tpu_custom_call.1} parent=67 // pred_check
          %p1512 = pneg %p158
        $region70: #{tpu_custom_call.1} parent=67 // pred_check_branch
          %1514 = sbr.rel (%p1512) target = $region72
        $region71: #{tpu_custom_call.1} parent=67 // pred_region
          %s1515 = sand.u32 %s143, 1
          %s1516 = scalar_lea.sflag [#allocation6], %s1515
          %s1517 = sand.u32 %s143, 1
          %s1518 = smul.addr %s1517, 4
          %s1519 = scalar_lea.vmem [#allocation13], %s1518
          %1520 = dma.done %s1516, 64
        $region72: #{tpu_custom_call.1} parent=67 // pred_fallthru
          _
      $region68: #{tpu_custom_call.1} parent=5 // pred_fallthru
        _
    $region6: #{tpu_custom_call.1} parent=1 // loop_footer
      %s23 = sadd.s32 1, %s19
    $region7: #{tpu_custom_call.1} parent=1 // loop_footer_branch
      %18 = sbr.rel target = $region3
    $region8: #{tpu_custom_call.1} parent=1 // loop_exit
      _
    %1521 = vsyncpa [#allocation5], 1
    %s1522 = scalar_lea.sflag [#allocation5], 1
    %1523 = vsyncpa %s1522, 1
    %1524 = vsyncpa [#allocation8], 1
    %1525 = vsyncpa [#allocation11], 1
    %1526 = vsyncpa [#allocation6], 1
    %s1527 = scalar_lea.sflag [#allocation6], 1
    %1528 = vsyncpa %s1527, 1

</llo_original>
